<compile_context>
chip_gen: v6e
topology: v6e:2x2x1
jax: 0.10.0
libtpu: 0.0.40
codegen_flags: <defaults>
</compile_context>

<pallas_src>
import functools
import math

import jax
import jax.numpy as jnp
from jax.experimental import pallas as pl
from jax.experimental.pallas import tpu as pltpu


LANES = 128      # last-dim tile
SUBLANES = 8     # second-to-last-dim tile


def _round_up(n, m):
    return ((n + m - 1) // m) * m


def _choose_tc(T, Bp, Dp, Hp, budget_bytes=24 * 1024 * 1024):
    """Largest time-chunk whose buffers fit the VMEM budget."""
    # per-time-step bytes: x block (x2 double-buffered), out block (x2), xp scratch
    per_t = Bp * (2 * Dp * 4 + 2 * Hp * 4 + 3 * Hp * 4)
    resident = (Dp * 3 * Hp * 2 + Hp * 3 * Hp * 2      # bf16 wi, wh
                + 3 * Hp * 4 + Hp * 4                  # biases
                + Bp * Hp * 4)                         # h carry
    avail = max(budget_bytes - resident, per_t)
    return int(max(1, min(avail // per_t, T, 256)))


def _vmem_limit_bytes(tc, Bp, Dp, Hp):
    need = (2 * tc * Bp * Dp * 4        # x blocks (double-buffered, f32)
            + 2 * tc * Bp * Hp * 4      # out blocks (double-buffered, f32)
            + tc * Bp * 3 * Hp * 4      # xp scratch (f32)
            + Dp * 3 * Hp * 2           # wi (bf16, resident)
            + Hp * 3 * Hp * 2           # wh (bf16, resident)
            + 3 * Hp * 4 + Hp * 4       # biases (f32, resident)
            + Bp * Hp * 4)              # h carry scratch
    return int(min(max(2 * need, 8 << 20), 64 << 20))


def gru_chunk_kernel(x_ref, wi_ref, bi_ref, wh_ref, bhn_ref, out_ref, h_ref, xp_ref):
    """One time-chunk of a GRU layer: fused input projection + serial recurrence.

    x_ref:   (Tc, B, Din)  f32 inputs for this chunk (time-major, padded)
    wi_ref:  (Din, 3H)     bf16 fused [W_ir | W_iz | W_in] (transposed)
    bi_ref:  (1, 3H)       f32  fused [b_ir+b_hr | b_iz+b_hz | b_in]
    wh_ref:  (H, 3H)       bf16 fused [W_hr | W_hz | W_hn] (transposed)
    bhn_ref: (1, H)        f32  b_hn (kept separate: it is gated by r)
    out_ref: (Tc, B, H)    f32  hidden state for every step of the chunk
    h_ref:   (B, H)        f32  VMEM scratch: hidden state carried across chunks
    xp_ref:  (Tc, B, 3H)   f32  VMEM scratch: per-chunk input-path pre-activations
    """
    Tc, B, Din = x_ref.shape
    H = wh_ref.shape[0]

    @pl.when(pl.program_id(0) == 0)
    def _init():
        h_ref[...] = jnp.zeros_like(h_ref)

    # Hoisted per-chunk input projection: one big lane-dense MXU matmul.
    # (Reshape is free: B % 8 == 0, Din % 128 == 0 -> no tile-boundary crossing.)
    x2 = x_ref[...].reshape(Tc * B, Din).astype(jnp.bfloat16)
    xp = jnp.dot(x2, wi_ref[...], preferred_element_type=jnp.float32) + bi_ref[...]
    xp_ref[...] = xp.reshape(Tc, B, 3 * H)

    # Hoisted bias broadcast (JAX does not CSE broadcast_in_dim inside the loop).
    bhn = jnp.broadcast_to(bhn_ref[...], (B, H))

    def sig(v):  # sigmoid via tanh identity -> single EUP transcendental per gate
        return 0.5 * (jnp.tanh(0.5 * v) + 1.0)

    def step(t, h):
        gx = xp_ref[t]                                                    # (B, 3H) f32
        gh = jnp.dot(h.astype(jnp.bfloat16), wh_ref[...],
                     preferred_element_type=jnp.float32)                  # 1 MXU push/step
        r = sig(gx[:, 0:H] + gh[:, 0:H])
        z = sig(gx[:, H:2 * H] + gh[:, H:2 * H])
        n = jnp.tanh(gx[:, 2 * H:] + r * (gh[:, 2 * H:] + bhn))
        h_new = (1.0 - z) * n + z * h
        out_ref[t] = h_new                                                # lane-dense (B,H) store
        return h_new

    h_last = jax.lax.fori_loop(0, Tc, step, h_ref[...])
    h_ref[...] = h_last                                                   # carry to next chunk


def gru_layer_tm(x_tm, p):
    """One GRU layer in padded time-major layout: (T, Bp, Dp) -> (T, Bp, Hp)."""
    T, Bp, Dp = x_tm.shape
    Hp = p["Hp"]

    tc = _choose_tc(T, Bp, Dp, Hp)
    Tp = _round_up(T, tc)
    if Tp != T:
        x_tm = jnp.pad(x_tm, ((0, Tp - T), (0, 0), (0, 0)))
    n_chunks = Tp // tc

    # TODO(synk): on v7x, add a leading "parallel" grid axis splitting Bp across
    # the 2 TensorCores when Bp >= 16 (the recurrence is independent per batch row).
    out = pl.pallas_call(
        gru_chunk_kernel,
        out_shape=jax.ShapeDtypeStruct((Tp, Bp, Hp), jnp.float32),
        grid_spec=pltpu.PrefetchScalarGridSpec(
            num_scalar_prefetch=0,
            grid=(n_chunks,),
            in_specs=[
                pl.BlockSpec((tc, Bp, Dp), lambda t: (t, 0, 0)),      # x chunk (pipelined)
                pl.BlockSpec((Dp, 3 * Hp), lambda t: (0, 0)),         # wi (resident)
                pl.BlockSpec((1, 3 * Hp), lambda t: (0, 0)),          # bi (resident)
                pl.BlockSpec((Hp, 3 * Hp), lambda t: (0, 0)),         # wh (resident)
                pl.BlockSpec((1, Hp), lambda t: (0, 0)),              # bhn (resident)
            ],
            out_specs=pl.BlockSpec((tc, Bp, Hp), lambda t: (t, 0, 0)),
            scratch_shapes=[
                pltpu.VMEM((Bp, Hp), jnp.float32),            # h carried across chunks
                pltpu.VMEM((tc, Bp, 3 * Hp), jnp.float32),    # per-chunk input projections
            ],
        ),
        compiler_params=pltpu.CompilerParams(
            dimension_semantics=("arbitrary",),               # sequential carry over time
            vmem_limit_bytes=_vmem_limit_bytes(tc, Bp, Dp, Hp),
        ),
    )(x_tm, p["wi"], p["bi"], p["wh"], p["bhn"])

    return out[:T] if Tp != T else out


def netd_forward(X, enc_prep, dec_prep):
    """NetD.forward: X (B, T, var_dim) -> (X_enc, X_dec), both batch_first."""
    B, T, Dv = X.shape
    Bp = _round_up(B, SUBLANES)

    x = jnp.transpose(X, (1, 0, 2))                                   # single transpose in
    x = jnp.pad(x, ((0, 0), (0, Bp - B), (0, enc_prep["Dp"] - Dv)))   # pad once at boundary

    enc_tm = gru_layer_tm(x, enc_prep)        # (T, Bp, Hp_enc); padded cols/rows stay 0
    dec_tm = gru_layer_tm(enc_tm, dec_prep)   # (T, Bp, Hp_dec); enc's Hp == dec's Dp

    X_enc = jnp.transpose(enc_tm[:, :B, :enc_prep["H"]], (1, 0, 2))   # single transpose out
    X_dec = jnp.transpose(dec_tm[:, :B, :dec_prep["H"]], (1, 0, 2))
    return X_enc, X_dec


def init_gru_params(key, input_dim, hidden_dim):
    """PyTorch nn.GRU layout: w_ih (3H,Din), w_hh (3H,H), b_ih (3H,), b_hh (3H,)."""
    H = hidden_dim
    stdv = 1.0 / math.sqrt(H)
    ks = jax.random.split(key, 4)
    u = lambda k, s: jax.random.uniform(k, s, jnp.float32, -stdv, stdv)
    return {
        "w_ih": u(ks[0], (3 * H, input_dim)),
        "w_hh": u(ks[1], (3 * H, H)),
        "b_ih": u(ks[2], (3 * H,)),
        "b_hh": u(ks[3], (3 * H,)),
    }


def prepare_layer(params):
    """Pad PyTorch-layout params to TPU tiles, fuse gates, cast MXU operands to bf16.

    wi:  (Dp, 3Hp) bf16 = [W_ir^T | W_iz^T | W_in^T] (each gate at its padded slot)
    wh:  (Hp, 3Hp) bf16 = [W_hr^T | W_hz^T | W_hn^T]
    bi:  (1, 3Hp)  f32  = [b_ir+b_hr | b_iz+b_hz | b_in]
    bhn: (1, Hp)   f32  = b_hn (kept separate because r gates it)
    """
    w_ih, w_hh = params["w_ih"], params["w_hh"]
    b_ih, b_hh = params["b_ih"], params["b_hh"]
    Din = w_ih.shape[1]
    H = w_hh.shape[1]
    Dp = _round_up(Din, LANES)
    Hp = _round_up(H, LANES)

    wi = jnp.zeros((Dp, 3 * Hp), jnp.float32)
    wh = jnp.zeros((Hp, 3 * Hp), jnp.float32)
    bi = jnp.zeros((1, 3 * Hp), jnp.float32)
    bhn = jnp.zeros((1, Hp), jnp.float32)
    for g in range(3):
        wi = wi.at[:Din, g * Hp:g * Hp + H].set(w_ih[g * H:(g + 1) * H, :].T)
        wh = wh.at[:H, g * Hp:g * Hp + H].set(w_hh[g * H:(g + 1) * H, :].T)
    bi = bi.at[0, 0 * Hp:0 * Hp + H].set(b_ih[0:H] + b_hh[0:H])
    bi = bi.at[0, 1 * Hp:1 * Hp + H].set(b_ih[H:2 * H] + b_hh[H:2 * H])
    bi = bi.at[0, 2 * Hp:2 * Hp + H].set(b_ih[2 * H:3 * H])
    bhn = bhn.at[0, :H].set(b_hh[2 * H:3 * H])

    return {"wi": wi.astype(jnp.bfloat16), "wh": wh.astype(jnp.bfloat16),
            "bi": bi, "bhn": bhn, "H": H, "Hp": Hp, "Din": Din, "Dp": Dp}


# ----- pure-JAX reference (PyTorch GRU equations, same bf16 MXU-operand numerics) -----
def gru_ref(x, p):
    H = p["w_hh"].shape[1]
    w_ih_t = p["w_ih"].T.astype(jnp.bfloat16)
    w_hh_t = p["w_hh"].T.astype(jnp.bfloat16)
    b_ih = p["b_ih"][None, :]
    b_hh = p["b_hh"][None, :]
    sig = lambda v: 0.5 * (jnp.tanh(0.5 * v) + 1.0)

    def step(h, xt):
        gi = jnp.dot(xt.astype(jnp.bfloat16), w_ih_t,
                     preferred_element_type=jnp.float32) + b_ih
        gh = jnp.dot(h.astype(jnp.bfloat16), w_hh_t,
                     preferred_element_type=jnp.float32) + b_hh
        r = sig(gi[:, :H] + gh[:, :H])
        z = sig(gi[:, H:2 * H] + gh[:, H:2 * H])
        n = jnp.tanh(gi[:, 2 * H:] + r * gh[:, 2 * H:])
        h_new = (1.0 - z) * n + z * h
        return h_new, h_new

    h0 = jnp.zeros((x.shape[0], H), jnp.float32)
    _, ys = jax.lax.scan(step, h0, jnp.transpose(x, (1, 0, 2)))
    return jnp.transpose(ys, (1, 0, 2))


if __name__ == "__main__":
    # X is (batch, wnd_dim, var_dim); GRU(var_dim -> RNN_hid_dim) then GRU(RNN_hid_dim -> var_dim).
    batch, wnd_dim, var_dim, rnn_hid_dim = 2, 8, 4, 32

    key = jax.random.PRNGKey(0)
    kx, kenc, kdec = jax.random.split(key, 3)

    X = jax.random.normal(kx, (batch, wnd_dim, var_dim), jnp.float32)
    enc_params = init_gru_params(kenc, var_dim, rnn_hid_dim)     # GRU(var_dim -> H)
    dec_params = init_gru_params(kdec, rnn_hid_dim, var_dim)     # GRU(H -> var_dim)

    enc_prep = prepare_layer(enc_params)
    dec_prep = prepare_layer(dec_params)

    fwd = jax.jit(lambda x: netd_forward(x, enc_prep, dec_prep))
    X_enc, X_dec = fwd(X)
    jax.block_until_ready((X_enc, X_dec))

    # correctness check against an independent PyTorch-layout reference GRU
    X_enc_ref = gru_ref(X, enc_params)
    X_dec_ref = gru_ref(X_enc_ref, dec_params)
    assert X_enc.shape == (batch, wnd_dim, rnn_hid_dim)
    assert X_dec.shape == (batch, wnd_dim, var_dim)
    assert jnp.allclose(X_enc, X_enc_ref, rtol=2e-3, atol=1e-3), float(
        jnp.max(jnp.abs(X_enc - X_enc_ref)))
    assert jnp.allclose(X_dec, X_dec_ref, rtol=2e-3, atol=1e-3), float(
        jnp.max(jnp.abs(X_dec - X_dec_ref)))

    print("KERNEL_OK")
</pallas_src>

<mosaic_0001>
module attributes {stable_mosaic.version = 11 : i64} {
  func.func @gru_chunk_kernel(%arg0: i32, %arg1: memref<8x8x128xf32, #tpu.memory_space<vmem>>, %arg2: memref<128x384xbf16, #tpu.memory_space<vmem>>, %arg3: memref<1x384xf32, #tpu.memory_space<vmem>>, %arg4: memref<128x384xbf16, #tpu.memory_space<vmem>>, %arg5: memref<1x128xf32, #tpu.memory_space<vmem>>, %arg6: memref<8x8x128xf32, #tpu.memory_space<vmem>>, %arg7: memref<8x128xf32, #tpu.memory_space<vmem>>, %arg8: memref<8x8x384xf32, #tpu.memory_space<vmem>>) attributes {dimension_semantics = [#tpu.dimension_semantics<arbitrary>], iteration_bounds = array<i64: 1>, scalar_prefetch = 0 : i64, scratch_operands = 2 : i64, tpu.core_type = #tpu.core_type<tc>, window_params = [{transform_indices = @transform_0, window_bounds = array<i64: 8, 8, 128>}, {pipeline_mode = #tpu.pipeline_mode<synchronous>, transform_indices = @transform_1, window_bounds = array<i64: 128, 384>}, {pipeline_mode = #tpu.pipeline_mode<synchronous>, transform_indices = @transform_2, window_bounds = array<i64: 1, 384>}, {pipeline_mode = #tpu.pipeline_mode<synchronous>, transform_indices = @transform_3, window_bounds = array<i64: 128, 384>}, {pipeline_mode = #tpu.pipeline_mode<synchronous>, transform_indices = @transform_4, window_bounds = array<i64: 1, 128>}, {transform_indices = @transform_5, window_bounds = array<i64: 8, 8, 128>}]} {
    %c0_i32 = arith.constant 0 : i32
    %0 = arith.cmpi eq, %arg0, %c0_i32 : i32
    %1 = arith.extui %0 : i1 to i32
    %c0_i32_0 = arith.constant 0 : i32
    %2 = arith.cmpi ne, %1, %c0_i32_0 : i32
    scf.if %2 {
      %cst_18 = arith.constant 0.000000e+00 : f32
      %20 = vector.broadcast %cst_18 : f32 to vector<8x128xf32>
      %c0_19 = arith.constant 0 : index
      %c0_20 = arith.constant 0 : index
      %21 = vector.load %arg7[%c0_19, %c0_20] : memref<8x128xf32, #tpu.memory_space<vmem>>, vector<8x128xf32>
      tpu.vector_store %arg7[%c0_19, %c0_20], %20 {strides = array<i32>} : memref<8x128xf32, #tpu.memory_space<vmem>>, vector<8x128xf32>,
    } else {
    }
    %c0 = arith.constant 0 : index
    %c0_1 = arith.constant 0 : index
    %c0_2 = arith.constant 0 : index
    %3 = vector.load %arg1[%c0, %c0_1, %c0_2] : memref<8x8x128xf32, #tpu.memory_space<vmem>>, vector<8x8x128xf32>
    %4 = vector.shape_cast %3 : vector<8x8x128xf32> to vector<64x128xf32>
    %5 = arith.truncf %4 : vector<64x128xf32> to vector<64x128xbf16>
    %c0_3 = arith.constant 0 : index
    %c0_4 = arith.constant 0 : index
    %6 = vector.load %arg2[%c0_3, %c0_4] : memref<128x384xbf16, #tpu.memory_space<vmem>>, vector<128x384xbf16>
    %cst = arith.constant dense<0.000000e+00> : vector<64x384xf32>
    %7 = tpu.matmul %5, %6, %cst {dimension_numbers = #tpu.dot_dimension_numbers<[1], [0], [0], [1], [0, 0, 1, 1], [], []>} : vector<64x128xbf16>, vector<128x384xbf16>, vector<64x384xf32> -> vector<64x384xf32>
    %c0_5 = arith.constant 0 : index
    %c0_6 = arith.constant 0 : index
    %8 = vector.load %arg3[%c0_5, %c0_6] : memref<1x384xf32, #tpu.memory_space<vmem>>, vector<1x384xf32>
    %9 = vector.broadcast %8 : vector<1x384xf32> to vector<64x384xf32>
    %10 = arith.addf %7, %9 : vector<64x384xf32>
    %11 = vector.shape_cast %10 : vector<64x384xf32> to vector<8x8x384xf32>
    %c0_7 = arith.constant 0 : index
    %c0_8 = arith.constant 0 : index
    %c0_9 = arith.constant 0 : index
    %12 = vector.load %arg8[%c0_7, %c0_8, %c0_9] : memref<8x8x384xf32, #tpu.memory_space<vmem>>, vector<8x8x384xf32>
    tpu.vector_store %arg8[%c0_7, %c0_8, %c0_9], %11 {strides = array<i32>} : memref<8x8x384xf32, #tpu.memory_space<vmem>>, vector<8x8x384xf32>,
    %c0_10 = arith.constant 0 : index
    %c0_11 = arith.constant 0 : index
    %13 = vector.load %arg5[%c0_10, %c0_11] : memref<1x128xf32, #tpu.memory_space<vmem>>, vector<1x128xf32>
    %14 = vector.shape_cast %13 : vector<1x128xf32> to vector<1x128xf32>
    %15 = vector.broadcast %14 : vector<1x128xf32> to vector<8x128xf32>
    %c0_12 = arith.constant 0 : index
    %c0_13 = arith.constant 0 : index
    %16 = vector.load %arg7[%c0_12, %c0_13] : memref<8x128xf32, #tpu.memory_space<vmem>>, vector<8x128xf32>
    %c0_i32_14 = arith.constant 0 : i32
    %c8_i32 = arith.constant 8 : i32
    %17 = arith.addi %c0_i32_14, %c8_i32 : i32
    %c1_i32 = arith.constant 1 : i32
    %18 = scf.for %arg9 = %c0_i32_14 to %17 step %c1_i32 iter_args(%arg10 = %16) -> (vector<8x128xf32>)  : i32 {
      %20 = arith.index_cast %arg9 : i32 to index
      %c0_18 = arith.constant 0 : index
      %c0_19 = arith.constant 0 : index
      %21 = vector.load %arg8[%20, %c0_18, %c0_19] : memref<8x8x384xf32, #tpu.memory_space<vmem>>, vector<1x8x384xf32>
      %22 = vector.shape_cast %21 : vector<1x8x384xf32> to vector<8x384xf32>
      %23 = arith.truncf %arg10 : vector<8x128xf32> to vector<8x128xbf16>
      %c0_20 = arith.constant 0 : index
      %c0_21 = arith.constant 0 : index
      %24 = vector.load %arg4[%c0_20, %c0_21] : memref<128x384xbf16, #tpu.memory_space<vmem>>, vector<128x384xbf16>
      %cst_22 = arith.constant dense<0.000000e+00> : vector<8x384xf32>
      %25 = tpu.matmul %23, %24, %cst_22 {dimension_numbers = #tpu.dot_dimension_numbers<[1], [0], [0], [1], [0, 0, 1, 1], [], []>} : vector<8x128xbf16>, vector<128x384xbf16>, vector<8x384xf32> -> vector<8x384xf32>
      %26 = vector.extract_strided_slice %22 {offsets = [0, 0], sizes = [8, 128], strides = [1, 1]} : vector<8x384xf32> to vector<8x128xf32>
      %27 = vector.extract_strided_slice %25 {offsets = [0, 0], sizes = [8, 128], strides = [1, 1]} : vector<8x384xf32> to vector<8x128xf32>
      %28 = arith.addf %26, %27 : vector<8x128xf32>
      %cst_23 = arith.constant 5.000000e-01 : f32
      %29 = vector.broadcast %cst_23 : f32 to vector<8x128xf32>
      %30 = arith.mulf %29, %28 : vector<8x128xf32>
      %31 = math.tanh %30 : vector<8x128xf32>
      %cst_24 = arith.constant 1.000000e+00 : f32
      %32 = vector.broadcast %cst_24 : f32 to vector<8x128xf32>
      %33 = arith.addf %31, %32 : vector<8x128xf32>
      %cst_25 = arith.constant 5.000000e-01 : f32
      %34 = vector.broadcast %cst_25 : f32 to vector<8x128xf32>
      %35 = arith.mulf %34, %33 : vector<8x128xf32>
      %36 = vector.extract_strided_slice %22 {offsets = [0, 128], sizes = [8, 128], strides = [1, 1]} : vector<8x384xf32> to vector<8x128xf32>
      %37 = vector.extract_strided_slice %25 {offsets = [0, 128], sizes = [8, 128], strides = [1, 1]} : vector<8x384xf32> to vector<8x128xf32>
      %38 = arith.addf %36, %37 : vector<8x128xf32>
      %cst_26 = arith.constant 5.000000e-01 : f32
      %39 = vector.broadcast %cst_26 : f32 to vector<8x128xf32>
      %40 = arith.mulf %39, %38 : vector<8x128xf32>
      %41 = math.tanh %40 : vector<8x128xf32>
      %cst_27 = arith.constant 1.000000e+00 : f32
      %42 = vector.broadcast %cst_27 : f32 to vector<8x128xf32>
      %43 = arith.addf %41, %42 : vector<8x128xf32>
      %cst_28 = arith.constant 5.000000e-01 : f32
      %44 = vector.broadcast %cst_28 : f32 to vector<8x128xf32>
      %45 = arith.mulf %44, %43 : vector<8x128xf32>
      %46 = vector.extract_strided_slice %22 {offsets = [0, 256], sizes = [8, 128], strides = [1, 1]} : vector<8x384xf32> to vector<8x128xf32>
      %47 = vector.extract_strided_slice %25 {offsets = [0, 256], sizes = [8, 128], strides = [1, 1]} : vector<8x384xf32> to vector<8x128xf32>
      %48 = arith.addf %47, %15 : vector<8x128xf32>
      %49 = arith.mulf %35, %48 : vector<8x128xf32>
      %50 = arith.addf %46, %49 : vector<8x128xf32>
      %51 = math.tanh %50 : vector<8x128xf32>
      %cst_29 = arith.constant 1.000000e+00 : f32
      %52 = vector.broadcast %cst_29 : f32 to vector<8x128xf32>
      %53 = arith.subf %52, %45 : vector<8x128xf32>
      %54 = arith.mulf %53, %51 : vector<8x128xf32>
      %55 = arith.mulf %45, %arg10 : vector<8x128xf32>
      %56 = arith.addf %54, %55 : vector<8x128xf32>
      %57 = arith.index_cast %arg9 : i32 to index
      %c0_30 = arith.constant 0 : index
      %c0_31 = arith.constant 0 : index
      %58 = vector.load %arg6[%57, %c0_30, %c0_31] : memref<8x8x128xf32, #tpu.memory_space<vmem>>, vector<1x8x128xf32>
      %59 = vector.shape_cast %58 : vector<1x8x128xf32> to vector<8x128xf32>
      %60 = vector.shape_cast %56 : vector<8x128xf32> to vector<1x8x128xf32>
      tpu.vector_store %arg6[%57, %c0_30, %c0_31], %60 {strides = array<i32>} : memref<8x8x128xf32, #tpu.memory_space<vmem>>, vector<1x8x128xf32>,
      scf.yield %56 : vector<8x128xf32>
    }
    %c8_i32_15 = arith.constant 8 : i32
    %c0_16 = arith.constant 0 : index
    %c0_17 = arith.constant 0 : index
    %19 = vector.load %arg7[%c0_16, %c0_17] : memref<8x128xf32, #tpu.memory_space<vmem>>, vector<8x128xf32>
    tpu.vector_store %arg7[%c0_16, %c0_17], %18 {strides = array<i32>} : memref<8x128xf32, #tpu.memory_space<vmem>>, vector<8x128xf32>,
    return
  }
  func.func @transform_0(%arg0: i32) -> (i32, i32, i32) {
    %c0_i32 = arith.constant 0 : i32
    %c0_i32_0 = arith.constant 0 : i32
    %c0_i32_1 = arith.constant 0 : i32
    return %arg0, %c0_i32, %c0_i32_0 : i32, i32, i32
  }
  func.func @transform_1(%arg0: i32) -> (i32, i32) {
    %c0_i32 = arith.constant 0 : i32
    %c0_i32_0 = arith.constant 0 : i32
    %c0_i32_1 = arith.constant 0 : i32
    return %c0_i32, %c0_i32_0 : i32, i32
  }
  func.func @transform_2(%arg0: i32) -> (i32, i32) {
    %c0_i32 = arith.constant 0 : i32
    %c0_i32_0 = arith.constant 0 : i32
    %c0_i32_1 = arith.constant 0 : i32
    return %c0_i32, %c0_i32_0 : i32, i32
  }
  func.func @transform_3(%arg0: i32) -> (i32, i32) {
    %c0_i32 = arith.constant 0 : i32
    %c0_i32_0 = arith.constant 0 : i32
    %c0_i32_1 = arith.constant 0 : i32
    return %c0_i32, %c0_i32_0 : i32, i32
  }
  func.func @transform_4(%arg0: i32) -> (i32, i32) {
    %c0_i32 = arith.constant 0 : i32
    %c0_i32_0 = arith.constant 0 : i32
    %c0_i32_1 = arith.constant 0 : i32
    return %c0_i32, %c0_i32_0 : i32, i32
  }
  func.func @transform_5(%arg0: i32) -> (i32, i32, i32) {
    %c0_i32 = arith.constant 0 : i32
    %c0_i32_0 = arith.constant 0 : i32
    %c0_i32_1 = arith.constant 0 : i32
    return %arg0, %c0_i32, %c0_i32_0 : i32, i32, i32
  }
}

module attributes {stable_mosaic.version = 11 : i64} {
  func.func @gru_chunk_kernel(%arg0: i32, %arg1: memref<8x8x128xf32, #tpu.memory_space<vmem>>, %arg2: memref<128x384xbf16, #tpu.memory_space<vmem>>, %arg3: memref<1x384xf32, #tpu.memory_space<vmem>>, %arg4: memref<128x384xbf16, #tpu.memory_space<vmem>>, %arg5: memref<1x128xf32, #tpu.memory_space<vmem>>, %arg6: memref<8x8x128xf32, #tpu.memory_space<vmem>>, %arg7: memref<8x128xf32, #tpu.memory_space<vmem>>, %arg8: memref<8x8x384xf32, #tpu.memory_space<vmem>>) attributes {dimension_semantics = [#tpu.dimension_semantics<arbitrary>], iteration_bounds = array<i64: 1>, scalar_prefetch = 0 : i64, scratch_operands = 2 : i64, tpu.core_type = #tpu.core_type<tc>, window_params = [{transform_indices = @transform_0, window_bounds = array<i64: 8, 8, 128>}, {pipeline_mode = #tpu.pipeline_mode<synchronous>, transform_indices = @transform_1, window_bounds = array<i64: 128, 384>}, {pipeline_mode = #tpu.pipeline_mode<synchronous>, transform_indices = @transform_2, window_bounds = array<i64: 1, 384>}, {pipeline_mode = #tpu.pipeline_mode<synchronous>, transform_indices = @transform_3, window_bounds = array<i64: 128, 384>}, {pipeline_mode = #tpu.pipeline_mode<synchronous>, transform_indices = @transform_4, window_bounds = array<i64: 1, 128>}, {transform_indices = @transform_5, window_bounds = array<i64: 8, 8, 128>}]} {
    %c0_i32 = arith.constant 0 : i32
    %0 = arith.cmpi eq, %arg0, %c0_i32 : i32
    %1 = arith.extui %0 : i1 to i32
    %c0_i32_0 = arith.constant 0 : i32
    %2 = arith.cmpi ne, %1, %c0_i32_0 : i32
    scf.if %2 {
      %cst_18 = arith.constant 0.000000e+00 : f32
      %20 = vector.broadcast %cst_18 : f32 to vector<8x128xf32>
      %c0_19 = arith.constant 0 : index
      %c0_20 = arith.constant 0 : index
      %21 = vector.load %arg7[%c0_19, %c0_20] : memref<8x128xf32, #tpu.memory_space<vmem>>, vector<8x128xf32>
      tpu.vector_store %arg7[%c0_19, %c0_20], %20 {strides = array<i32>} : memref<8x128xf32, #tpu.memory_space<vmem>>, vector<8x128xf32>,
    } else {
    }
    %c0 = arith.constant 0 : index
    %c0_1 = arith.constant 0 : index
    %c0_2 = arith.constant 0 : index
    %3 = vector.load %arg1[%c0, %c0_1, %c0_2] : memref<8x8x128xf32, #tpu.memory_space<vmem>>, vector<8x8x128xf32>
    %4 = vector.shape_cast %3 : vector<8x8x128xf32> to vector<64x128xf32>
    %5 = arith.truncf %4 : vector<64x128xf32> to vector<64x128xbf16>
    %c0_3 = arith.constant 0 : index
    %c0_4 = arith.constant 0 : index
    %6 = vector.load %arg2[%c0_3, %c0_4] : memref<128x384xbf16, #tpu.memory_space<vmem>>, vector<128x384xbf16>
    %cst = arith.constant dense<0.000000e+00> : vector<64x384xf32>
    %7 = tpu.matmul %5, %6, %cst {dimension_numbers = #tpu.dot_dimension_numbers<[1], [0], [0], [1], [0, 0, 1, 1], [], []>} : vector<64x128xbf16>, vector<128x384xbf16>, vector<64x384xf32> -> vector<64x384xf32>
    %c0_5 = arith.constant 0 : index
    %c0_6 = arith.constant 0 : index
    %8 = vector.load %arg3[%c0_5, %c0_6] : memref<1x384xf32, #tpu.memory_space<vmem>>, vector<1x384xf32>
    %9 = vector.broadcast %8 : vector<1x384xf32> to vector<64x384xf32>
    %10 = arith.addf %7, %9 : vector<64x384xf32>
    %11 = vector.shape_cast %10 : vector<64x384xf32> to vector<8x8x384xf32>
    %c0_7 = arith.constant 0 : index
    %c0_8 = arith.constant 0 : index
    %c0_9 = arith.constant 0 : index
    %12 = vector.load %arg8[%c0_7, %c0_8, %c0_9] : memref<8x8x384xf32, #tpu.memory_space<vmem>>, vector<8x8x384xf32>
    tpu.vector_store %arg8[%c0_7, %c0_8, %c0_9], %11 {strides = array<i32>} : memref<8x8x384xf32, #tpu.memory_space<vmem>>, vector<8x8x384xf32>,
    %c0_10 = arith.constant 0 : index
    %c0_11 = arith.constant 0 : index
    %13 = vector.load %arg5[%c0_10, %c0_11] : memref<1x128xf32, #tpu.memory_space<vmem>>, vector<1x128xf32>
    %14 = vector.shape_cast %13 : vector<1x128xf32> to vector<1x128xf32>
    %15 = vector.broadcast %14 : vector<1x128xf32> to vector<8x128xf32>
    %c0_12 = arith.constant 0 : index
    %c0_13 = arith.constant 0 : index
    %16 = vector.load %arg7[%c0_12, %c0_13] : memref<8x128xf32, #tpu.memory_space<vmem>>, vector<8x128xf32>
    %c0_i32_14 = arith.constant 0 : i32
    %c8_i32 = arith.constant 8 : i32
    %17 = arith.addi %c0_i32_14, %c8_i32 : i32
    %c1_i32 = arith.constant 1 : i32
    %18 = scf.for %arg9 = %c0_i32_14 to %17 step %c1_i32 iter_args(%arg10 = %16) -> (vector<8x128xf32>)  : i32 {
      %20 = arith.index_cast %arg9 : i32 to index
      %c0_18 = arith.constant 0 : index
      %c0_19 = arith.constant 0 : index
      %21 = vector.load %arg8[%20, %c0_18, %c0_19] : memref<8x8x384xf32, #tpu.memory_space<vmem>>, vector<1x8x384xf32>
      %22 = vector.shape_cast %21 : vector<1x8x384xf32> to vector<8x384xf32>
      %23 = arith.truncf %arg10 : vector<8x128xf32> to vector<8x128xbf16>
      %c0_20 = arith.constant 0 : index
      %c0_21 = arith.constant 0 : index
      %24 = vector.load %arg4[%c0_20, %c0_21] : memref<128x384xbf16, #tpu.memory_space<vmem>>, vector<128x384xbf16>
      %cst_22 = arith.constant dense<0.000000e+00> : vector<8x384xf32>
      %25 = tpu.matmul %23, %24, %cst_22 {dimension_numbers = #tpu.dot_dimension_numbers<[1], [0], [0], [1], [0, 0, 1, 1], [], []>} : vector<8x128xbf16>, vector<128x384xbf16>, vector<8x384xf32> -> vector<8x384xf32>
      %26 = vector.extract_strided_slice %22 {offsets = [0, 0], sizes = [8, 128], strides = [1, 1]} : vector<8x384xf32> to vector<8x128xf32>
      %27 = vector.extract_strided_slice %25 {offsets = [0, 0], sizes = [8, 128], strides = [1, 1]} : vector<8x384xf32> to vector<8x128xf32>
      %28 = arith.addf %26, %27 : vector<8x128xf32>
      %cst_23 = arith.constant 5.000000e-01 : f32
      %29 = vector.broadcast %cst_23 : f32 to vector<8x128xf32>
      %30 = arith.mulf %29, %28 : vector<8x128xf32>
      %31 = math.tanh %30 : vector<8x128xf32>
      %cst_24 = arith.constant 1.000000e+00 : f32
      %32 = vector.broadcast %cst_24 : f32 to vector<8x128xf32>
      %33 = arith.addf %31, %32 : vector<8x128xf32>
      %cst_25 = arith.constant 5.000000e-01 : f32
      %34 = vector.broadcast %cst_25 : f32 to vector<8x128xf32>
      %35 = arith.mulf %34, %33 : vector<8x128xf32>
      %36 = vector.extract_strided_slice %22 {offsets = [0, 128], sizes = [8, 128], strides = [1, 1]} : vector<8x384xf32> to vector<8x128xf32>
      %37 = vector.extract_strided_slice %25 {offsets = [0, 128], sizes = [8, 128], strides = [1, 1]} : vector<8x384xf32> to vector<8x128xf32>
      %38 = arith.addf %36, %37 : vector<8x128xf32>
      %cst_26 = arith.constant 5.000000e-01 : f32
      %39 = vector.broadcast %cst_26 : f32 to vector<8x128xf32>
      %40 = arith.mulf %39, %38 : vector<8x128xf32>
      %41 = math.tanh %40 : vector<8x128xf32>
      %cst_27 = arith.constant 1.000000e+00 : f32
      %42 = vector.broadcast %cst_27 : f32 to vector<8x128xf32>
      %43 = arith.addf %41, %42 : vector<8x128xf32>
      %cst_28 = arith.constant 5.000000e-01 : f32
      %44 = vector.broadcast %cst_28 : f32 to vector<8x128xf32>
      %45 = arith.mulf %44, %43 : vector<8x128xf32>
      %46 = vector.extract_strided_slice %22 {offsets = [0, 256], sizes = [8, 128], strides = [1, 1]} : vector<8x384xf32> to vector<8x128xf32>
      %47 = vector.extract_strided_slice %25 {offsets = [0, 256], sizes = [8, 128], strides = [1, 1]} : vector<8x384xf32> to vector<8x128xf32>
      %48 = arith.addf %47, %15 : vector<8x128xf32>
      %49 = arith.mulf %35, %48 : vector<8x128xf32>
      %50 = arith.addf %46, %49 : vector<8x128xf32>
      %51 = math.tanh %50 : vector<8x128xf32>
      %cst_29 = arith.constant 1.000000e+00 : f32
      %52 = vector.broadcast %cst_29 : f32 to vector<8x128xf32>
      %53 = arith.subf %52, %45 : vector<8x128xf32>
      %54 = arith.mulf %53, %51 : vector<8x128xf32>
      %55 = arith.mulf %45, %arg10 : vector<8x128xf32>
      %56 = arith.addf %54, %55 : vector<8x128xf32>
      %57 = arith.index_cast %arg9 : i32 to index
      %c0_30 = arith.constant 0 : index
      %c0_31 = arith.constant 0 : index
      %58 = vector.load %arg6[%57, %c0_30, %c0_31] : memref<8x8x128xf32, #tpu.memory_space<vmem>>, vector<1x8x128xf32>
      %59 = vector.shape_cast %58 : vector<1x8x128xf32> to vector<8x128xf32>
      %60 = vector.shape_cast %56 : vector<8x128xf32> to vector<1x8x128xf32>
      tpu.vector_store %arg6[%57, %c0_30, %c0_31], %60 {strides = array<i32>} : memref<8x8x128xf32, #tpu.memory_space<vmem>>, vector<1x8x128xf32>,
      scf.yield %56 : vector<8x128xf32>
    }
    %c8_i32_15 = arith.constant 8 : i32
    %c0_16 = arith.constant 0 : index
    %c0_17 = arith.constant 0 : index
    %19 = vector.load %arg7[%c0_16, %c0_17] : memref<8x128xf32, #tpu.memory_space<vmem>>, vector<8x128xf32>
    tpu.vector_store %arg7[%c0_16, %c0_17], %18 {strides = array<i32>} : memref<8x128xf32, #tpu.memory_space<vmem>>, vector<8x128xf32>,
    return
  }
  func.func @transform_0(%arg0: i32) -> (i32, i32, i32) {
    %c0_i32 = arith.constant 0 : i32
    %c0_i32_0 = arith.constant 0 : i32
    %c0_i32_1 = arith.constant 0 : i32
    return %arg0, %c0_i32, %c0_i32_0 : i32, i32, i32
  }
  func.func @transform_1(%arg0: i32) -> (i32, i32) {
    %c0_i32 = arith.constant 0 : i32
    %c0_i32_0 = arith.constant 0 : i32
    %c0_i32_1 = arith.constant 0 : i32
    return %c0_i32, %c0_i32_0 : i32, i32
  }
  func.func @transform_2(%arg0: i32) -> (i32, i32) {
    %c0_i32 = arith.constant 0 : i32
    %c0_i32_0 = arith.constant 0 : i32
    %c0_i32_1 = arith.constant 0 : i32
    return %c0_i32, %c0_i32_0 : i32, i32
  }
  func.func @transform_3(%arg0: i32) -> (i32, i32) {
    %c0_i32 = arith.constant 0 : i32
    %c0_i32_0 = arith.constant 0 : i32
    %c0_i32_1 = arith.constant 0 : i32
    return %c0_i32, %c0_i32_0 : i32, i32
  }
  func.func @transform_4(%arg0: i32) -> (i32, i32) {
    %c0_i32 = arith.constant 0 : i32
    %c0_i32_0 = arith.constant 0 : i32
    %c0_i32_1 = arith.constant 0 : i32
    return %c0_i32, %c0_i32_0 : i32, i32
  }
  func.func @transform_5(%arg0: i32) -> (i32, i32, i32) {
    %c0_i32 = arith.constant 0 : i32
    %c0_i32_0 = arith.constant 0 : i32
    %c0_i32_1 = arith.constant 0 : i32
    return %arg0, %c0_i32, %c0_i32_0 : i32, i32, i32
  }
}

</mosaic_0001>

<llo_original>
// kernel: _lambda_.2
$region0: #{_lambda_.2}
  #allocation0 [shape = 'u32[]', space=smem, size = 0x4, offset = 0x4, fixed_abs, tag = 'smem constant byte address 0x4 - core index']
  #allocation1 [shape = 'u32[144,128]{1,0:T(1,128)}', space=vmem, size = 0x12000, scoped, tag = 'internal scratch']
  #allocation2 [shape = 'f32[8,128]{1,0:T(8,128)}', space=vmem, size = 0x1000, scoped, tag = 'scratch operand']
  #allocation3 [shape = 'f32[8,8,384]{2,1,0:T(8,128)}', space=vmem, size = 0x18000, scoped, tag = 'scratch operand']
  %s0 = inlined_call_operand.vmem [shape: f32[8,8,128], index: 0, kind: input, shape index: {}]
  %s1 = inlined_call_operand.hbm [shape: bf16[128,384], index: 1, kind: input, shape index: {}]
  %s2 = inlined_call_operand.vmem [shape: f32[1,384], index: 2, kind: input, shape index: {}]
  %s3 = inlined_call_operand.hbm [shape: bf16[128,384], index: 3, kind: input, shape index: {}]
  %s4 = inlined_call_operand.vmem [shape: f32[1,128], index: 4, kind: input, shape index: {}]
  %s5 = inlined_call_operand.vmem [shape: f32[8,8,128], index: 5, kind: output, shape index: {}]
  %s6 = sld [smem:[#allocation0]]
  $region49: #{_lambda_.2} parent=0
    _
  %s8 = ssub.s32 1, %s6
  %s9 = scalar_select 0, %s8, %s6
  $region1: #{_lambda_.2} parent=0
    #allocation4 [shape = 'u8[98304]{0}', space=vmem, size = 0x18000, scoped, tag = 'input window, operand 1, single buffered']
    #allocation5 [shape = 's32[1]{0}', space=sflag, size = 0x4, scoped, tag = 'scoped memory for _lambda_.2']
    #allocation6 [shape = 'u8[98304]{0}', space=vmem, size = 0x18000, scoped, tag = 'input window, operand 3, single buffered']
    #allocation7 [shape = 's32[1]{0}', space=sflag, size = 0x4, scoped, tag = 'scoped memory for _lambda_.2']
    %10 = vsyncpa [#allocation5], 0
    %11 = vsyncpa [#allocation7], 0
    // Predicated region
    $region2: #{_lambda_.2} parent=1 // pred_check
      _
    $region3: #{_lambda_.2} parent=1 // pred_check_branch
      %13 = sbr.rel (0) target = $region5
    $region4: #{_lambda_.2} parent=1 // pred_region
      _
    $region5: #{_lambda_.2} parent=1 // pred_fallthru
      _
    // Predicated region
    $region6: #{_lambda_.2} parent=1 // pred_check
      _
    $region7: #{_lambda_.2} parent=1 // pred_check_branch
      %15 = sbr.rel (0) target = $region9
    $region8: #{_lambda_.2} parent=1 // pred_region
      %s17 = ssub.s32 3072, 3072
      %18 = vsyncadd [#allocation5], %s17
      %s19 = sshll.u32 [#allocation4], 4
      %s20 = int_to_ptr.vmem [resolvable:$true] %s19
      %25 = dma.hbm_to_vmem [thread:$0]  %s1, 3072, %s20, [#allocation5], 192, 192, 12
    $region9: #{_lambda_.2} parent=1 // pred_fallthru
      _
    // Predicated region
    $region10: #{_lambda_.2} parent=1 // pred_check
      _
    $region11: #{_lambda_.2} parent=1 // pred_check_branch
      %27 = sbr.rel (0) target = $region13
    $region12: #{_lambda_.2} parent=1 // pred_region
      _
    $region13: #{_lambda_.2} parent=1 // pred_fallthru
      _
    // Predicated region
    $region14: #{_lambda_.2} parent=1 // pred_check
      _
    $region15: #{_lambda_.2} parent=1 // pred_check_branch
      %29 = sbr.rel (0) target = $region17
    $region16: #{_lambda_.2} parent=1 // pred_region
      %s31 = ssub.s32 3072, 3072
      %32 = vsyncadd [#allocation7], %s31
      %s33 = sshll.u32 [#allocation6], 4
      %s34 = int_to_ptr.vmem [resolvable:$true] %s33
      %39 = dma.hbm_to_vmem [thread:$0]  %s3, 3072, %s34, [#allocation7], 192, 192, 12
    $region17: #{_lambda_.2} parent=1 // pred_fallthru
      _
    // Predicated region
    $region18: #{_lambda_.2} parent=1 // pred_check
      _
    $region19: #{_lambda_.2} parent=1 // pred_check_branch
      %41 = sbr.rel (0) target = $region21
    $region20: #{_lambda_.2} parent=1 // pred_region
      _
    $region21: #{_lambda_.2} parent=1 // pred_fallthru
      _
    // Predicated region
    $region22: #{_lambda_.2} parent=1 // pred_check
      _
    $region23: #{_lambda_.2} parent=1 // pred_check_branch
      %43 = sbr.rel (0) target = $region25
    $region24: #{_lambda_.2} parent=1 // pred_region
      %44 = dma.done [#allocation5], 3072
    $region25: #{_lambda_.2} parent=1 // pred_fallthru
      _
    // Predicated region
    $region26: #{_lambda_.2} parent=1 // pred_check
      _
    $region27: #{_lambda_.2} parent=1 // pred_check_branch
      %46 = sbr.rel (0) target = $region29
    $region28: #{_lambda_.2} parent=1 // pred_region
      %47 = dma.done [#allocation7], 3072
    $region29: #{_lambda_.2} parent=1 // pred_fallthru
      _
    %p49 = scmp.eq.s32.totalorder 0, 0
    // Predicated region
    $region30: #{_lambda_.2} parent=1 // pred_check
      %p50 = pneg %p49
    $region31: #{_lambda_.2} parent=1 // pred_check_branch
      %52 = sbr.rel (%p50) target = $region33
    $region32: #{_lambda_.2} parent=1 // pred_region
      %53 = vst [vmem:[#allocation2] sm:$0xff] 0.0
    $region33: #{_lambda_.2} parent=1 // pred_fallthru
      _
    %v54 = vld [vmem:[%s0] sm:$0xff]
    %v55 = vld [vmem:[%s0 + $0x8] sm:$0xff]
    %v56 = vld [vmem:[%s0 + $0x10] sm:$0xff]
    %v57 = vld [vmem:[%s0 + $0x18] sm:$0xff]
    %v58 = vld [vmem:[%s0 + $0x20] sm:$0xff]
    %v59 = vld [vmem:[%s0 + $0x28] sm:$0xff]
    %v60 = vld [vmem:[%s0 + $0x30] sm:$0xff]
    %v61 = vld [vmem:[%s0 + $0x38] sm:$0xff]
    %v62 = vpack.c.bf16 %v55, %v54
    %v63 = vpack.c.bf16 %v57, %v56
    %v64 = vpack.c.bf16 %v59, %v58
    %v65 = vpack.c.bf16 %v61, %v60
    %v66 = vld [vmem:[#allocation4] sm:$0xff]
    %v67 = vld [vmem:[#allocation4 + $0x8] sm:$0xf]
    %v68 = vld [vmem:[#allocation4 + $0xc] sm:$0xff]
    %v69 = vld [vmem:[#allocation4 + $0x14] sm:$0xf]
    %v70 = vld [vmem:[#allocation4 + $0x18] sm:$0xff]
    %v71 = vld [vmem:[#allocation4 + $0x20] sm:$0xf]
    %v72 = vld [vmem:[#allocation4 + $0x24] sm:$0xff]
    %v73 = vld [vmem:[#allocation4 + $0x2c] sm:$0xf]
    %v74 = vld [vmem:[#allocation4 + $0x30] sm:$0xff]
    %v75 = vld [vmem:[#allocation4 + $0x38] sm:$0xf]
    %v76 = vld [vmem:[#allocation4 + $0x3c] sm:$0xff]
    %v77 = vld [vmem:[#allocation4 + $0x44] sm:$0xf]
    %v78 = vld [vmem:[#allocation4 + $0x48] sm:$0xff]
    %v79 = vld [vmem:[#allocation4 + $0x50] sm:$0xf]
    %v80 = vld [vmem:[#allocation4 + $0x54] sm:$0xff]
    %v81 = vld [vmem:[#allocation4 + $0x5c] sm:$0xf]
    %v82 = vld [vmem:[#allocation4 + $0x60] sm:$0xff]
    %v83 = vld [vmem:[#allocation4 + $0x68] sm:$0xf]
    %v84 = vld [vmem:[#allocation4 + $0x6c] sm:$0xff]
    %v85 = vld [vmem:[#allocation4 + $0x74] sm:$0xf]
    %v86 = vld [vmem:[#allocation4 + $0x78] sm:$0xff]
    %v87 = vld [vmem:[#allocation4 + $0x80] sm:$0xf]
    %v88 = vld [vmem:[#allocation4 + $0x84] sm:$0xff]
    %v89 = vld [vmem:[#allocation4 + $0x8c] sm:$0xf]
    %v90 = vld [vmem:[#allocation4 + $0x90] sm:$0xff]
    %v91 = vld [vmem:[#allocation4 + $0x98] sm:$0xf]
    %v92 = vld [vmem:[#allocation4 + $0x9c] sm:$0xff]
    %v93 = vld [vmem:[#allocation4 + $0xa4] sm:$0xf]
    %v94 = vld [vmem:[#allocation4 + $0xa8] sm:$0xff]
    %v95 = vld [vmem:[#allocation4 + $0xb0] sm:$0xf]
    %v96 = vld [vmem:[#allocation4 + $0xb4] sm:$0xff]
    %v97 = vld [vmem:[#allocation4 + $0xbc] sm:$0xf]
    %v98 = vld [vmem:[%s2] sm:$0x7]
    %v100 = vlaneseq
    %v101 = vshrl.u32 %v100, 7
    %v102 = vsub.s32 0, %v101
    %v103 = vrot.slane %v98, %v102
    %v104 = vlaneseq
    %v105 = vshrl.u32 %v104, 7
    %v106 = vsub.s32 1, %v105
    %v107 = vrot.slane %v98, %v106
    %v108 = vlaneseq
    %v109 = vshrl.u32 %v108, 7
    %v110 = vsub.s32 2, %v109
    %v111 = vrot.slane %v98, %v110
    %v147 = vunpack.c.l.b16 %v66
    %v148 = vunpack.c.h.b16 %v66
    %v149 = vunpack.c.l.b16 %v67
    %v150 = vunpack.c.l.b16 %v68
    %v151 = vunpack.c.h.b16 %v68
    %v152 = vunpack.c.l.b16 %v69
    %v153 = vunpack.c.l.b16 %v70
    %v154 = vunpack.c.h.b16 %v70
    %v155 = vunpack.c.l.b16 %v71
    %v156 = vunpack.c.l.b16 %v72
    %v157 = vunpack.c.h.b16 %v72
    %v158 = vunpack.c.l.b16 %v73
    %v159 = vunpack.c.l.b16 %v74
    %v160 = vunpack.c.h.b16 %v74
    %v161 = vunpack.c.l.b16 %v75
    %v162 = vunpack.c.l.b16 %v76
    %v163 = vunpack.c.h.b16 %v76
    %v164 = vunpack.c.l.b16 %v77
    %v165 = vunpack.c.l.b16 %v78
    %v166 = vunpack.c.h.b16 %v78
    %v167 = vunpack.c.l.b16 %v79
    %v168 = vunpack.c.l.b16 %v80
    %v169 = vunpack.c.h.b16 %v80
    %v170 = vunpack.c.l.b16 %v81
    %v171 = vunpack.c.l.b16 %v82
    %v172 = vunpack.c.h.b16 %v82
    %v173 = vunpack.c.l.b16 %v83
    %v174 = vunpack.c.l.b16 %v84
    %v175 = vunpack.c.h.b16 %v84
    %v176 = vunpack.c.l.b16 %v85
    %v177 = vunpack.c.l.b16 %v86
    %v178 = vunpack.c.h.b16 %v86
    %v179 = vunpack.c.l.b16 %v87
    %v180 = vunpack.c.l.b16 %v88
    %v181 = vunpack.c.h.b16 %v88
    %v182 = vunpack.c.l.b16 %v89
    %v183 = vunpack.c.l.b16 %v90
    %v184 = vunpack.c.h.b16 %v90
    %v185 = vunpack.c.l.b16 %v91
    %v186 = vunpack.c.l.b16 %v92
    %v187 = vunpack.c.h.b16 %v92
    %v188 = vunpack.c.l.b16 %v93
    %v189 = vunpack.c.l.b16 %v94
    %v190 = vunpack.c.h.b16 %v94
    %v191 = vunpack.c.l.b16 %v95
    %v192 = vunpack.c.l.b16 %v96
    %v193 = vunpack.c.h.b16 %v96
    %v194 = vunpack.c.l.b16 %v97
    %v195 = vpack.c.b16 %v150, %v147
    %v196 = vpack.c.b16 %v151, %v148
    %v197 = vpack.c.b16 %v152, %v149
    %v198 = vpack.c.b16 %v156, %v153
    %v199 = vpack.c.b16 %v157, %v154
    %v200 = vpack.c.b16 %v158, %v155
    %v201 = vpack.c.b16 %v162, %v159
    %v202 = vpack.c.b16 %v163, %v160
    %v203 = vpack.c.b16 %v164, %v161
    %v204 = vpack.c.b16 %v168, %v165
    %v205 = vpack.c.b16 %v169, %v166
    %v206 = vpack.c.b16 %v170, %v167
    %v207 = vpack.c.b16 %v174, %v171
    %v208 = vpack.c.b16 %v175, %v172
    %v209 = vpack.c.b16 %v176, %v173
    %v210 = vpack.c.b16 %v180, %v177
    %v211 = vpack.c.b16 %v181, %v178
    %v212 = vpack.c.b16 %v182, %v179
    %v213 = vpack.c.b16 %v186, %v183
    %v214 = vpack.c.b16 %v187, %v184
    %v215 = vpack.c.b16 %v188, %v185
    %v216 = vpack.c.b16 %v192, %v189
    %v217 = vpack.c.b16 %v193, %v190
    %v218 = vpack.c.b16 %v194, %v191
    %243 = vmatprep.subr.bf16.mxu0 %v217
    %244 = vmatpush1.bf16.msra.mxu0 %v216
    %245 = vmatprep.subr.bf16.mxu0 %v214
    %246 = vmatpush1.bf16.msra.mxu0 %v213
    %247 = vmatprep.subr.bf16.mxu0 %v211
    %248 = vmatpush1.bf16.msra.mxu0 %v210
    %249 = vmatprep.subr.bf16.mxu0 %v208
    %250 = vmatpush1.bf16.msra.mxu0 %v207
    %251 = vmatprep.subr.bf16.mxu0 %v205
    %252 = vmatpush1.bf16.msra.mxu0 %v204
    %253 = vmatprep.subr.bf16.mxu0 %v202
    %254 = vmatpush1.bf16.msra.mxu0 %v201
    %255 = vmatprep.subr.bf16.mxu0 %v199
    %256 = vmatpush1.bf16.msra.mxu0 %v198
    %257 = vmatprep.subr.bf16.mxu0 %v196
    %258 = vmatpush1.bf16.msra.mxu0 %v195
    %259 = vmatprep.subr.bf16.mxu0 0
    %260 = vmatpush2.bf16.msra.mxu0 0
    %261 = vmatprep.subr.bf16.mxu0 0
    %262 = vmatpush2.bf16.msra.mxu0 0
    %263 = vmatprep.subr.bf16.mxu0 0
    %264 = vmatpush2.bf16.msra.mxu0 0
    %265 = vmatprep.subr.bf16.mxu0 0
    %266 = vmatpush2.bf16.msra.mxu0 0
    %267 = vmatprep.subr.bf16.mxu0 0
    %268 = vmatpush2.bf16.msra.mxu0 0
    %269 = vmatprep.subr.bf16.mxu0 0
    %270 = vmatpush2.bf16.msra.mxu0 0
    %271 = vmatprep.subr.bf16.mxu0 0
    %272 = vmatpush2.bf16.msra.mxu0 0
    %273 = vmatprep.subr.bf16.mxu0 0
    %274 = vmatpush2.bf16.msra.mxu0 0
    %275 = vmatprep.mubr.bf16.mxu0 0
    %276 = vmatmul.mubr.bf16.gmra.mxu0 %v62
    %v277 = vpop.f32.mrf.mxu0
    %v278 = vadd.f32 %v103, %v277
    %v279 = vpop.f32.mrf.mxu0
    %v280 = vadd.f32 %v107, %v279
    %v281 = vpop.f32.mrf.mxu0
    %v282 = vadd.f32 %v103, %v281
    %v283 = vpop.f32.mrf.mxu0
    %v284 = vadd.f32 %v107, %v283
    %285 = vmatprep.mubr.bf16.mxu0 0
    %286 = vmatmul.mubr.bf16.gmra.mxu0 %v63
    %v287 = vpop.f32.mrf.mxu0
    %v288 = vadd.f32 %v103, %v287
    %v289 = vpop.f32.mrf.mxu0
    %v290 = vadd.f32 %v107, %v289
    %v291 = vpop.f32.mrf.mxu0
    %v292 = vadd.f32 %v103, %v291
    %v293 = vpop.f32.mrf.mxu0
    %v294 = vadd.f32 %v107, %v293
    %295 = vmatprep.mubr.bf16.mxu0 0
    %296 = vmatmul.mubr.bf16.gmra.mxu0 %v64
    %v297 = vpop.f32.mrf.mxu0
    %v298 = vadd.f32 %v103, %v297
    %v299 = vpop.f32.mrf.mxu0
    %v300 = vadd.f32 %v107, %v299
    %v301 = vpop.f32.mrf.mxu0
    %v302 = vadd.f32 %v103, %v301
    %v303 = vpop.f32.mrf.mxu0
    %v304 = vadd.f32 %v107, %v303
    %305 = vmatprep.mubr.bf16.mxu0 0
    %306 = vmatmul.mubr.bf16.gmra.mxu0 %v65
    %v307 = vpop.f32.mrf.mxu0
    %v308 = vadd.f32 %v103, %v307
    %v309 = vpop.f32.mrf.mxu0
    %v310 = vadd.f32 %v107, %v309
    %v311 = vpop.f32.mrf.mxu0
    %v312 = vadd.f32 %v103, %v311
    %v313 = vpop.f32.mrf.mxu0
    %v314 = vadd.f32 %v107, %v313
    %315 = vdwg.mxu0
    %316 = vmatprep.subr.bf16.mxu0 0
    %317 = vmatpush1.bf16.msra.mxu0 %v218
    %318 = vmatprep.subr.bf16.mxu0 0
    %319 = vmatpush1.bf16.msra.mxu0 %v215
    %320 = vmatprep.subr.bf16.mxu0 0
    %321 = vmatpush1.bf16.msra.mxu0 %v212
    %322 = vmatprep.subr.bf16.mxu0 0
    %323 = vmatpush1.bf16.msra.mxu0 %v209
    %324 = vmatprep.subr.bf16.mxu0 0
    %325 = vmatpush1.bf16.msra.mxu0 %v206
    %326 = vmatprep.subr.bf16.mxu0 0
    %327 = vmatpush1.bf16.msra.mxu0 %v203
    %328 = vmatprep.subr.bf16.mxu0 0
    %329 = vmatpush1.bf16.msra.mxu0 %v200
    %330 = vmatprep.subr.bf16.mxu0 0
    %331 = vmatpush1.bf16.msra.mxu0 %v197
    %332 = vmatprep.subr.bf16.mxu0 0
    %333 = vmatpush2.bf16.msra.mxu0 0
    %334 = vmatprep.subr.bf16.mxu0 0
    %335 = vmatpush2.bf16.msra.mxu0 0
    %336 = vmatprep.subr.bf16.mxu0 0
    %337 = vmatpush2.bf16.msra.mxu0 0
    %338 = vmatprep.subr.bf16.mxu0 0
    %339 = vmatpush2.bf16.msra.mxu0 0
    %340 = vmatprep.subr.bf16.mxu0 0
    %341 = vmatpush2.bf16.msra.mxu0 0
    %342 = vmatprep.subr.bf16.mxu0 0
    %343 = vmatpush2.bf16.msra.mxu0 0
    %344 = vmatprep.subr.bf16.mxu0 0
    %345 = vmatpush2.bf16.msra.mxu0 0
    %346 = vmatprep.subr.bf16.mxu0 0
    %347 = vmatpush2.bf16.msra.mxu0 0
    %348 = vmatprep.mubr.bf16.mxu0 0
    %349 = vmatmul.mubr.bf16.gmra.mxu0 %v62
    %v350 = vpop.f32.mrf.mxu0
    %v351 = vadd.f32 %v111, %v350
    %v352 = vpop.f32.mrf.mxu0
    %v353 = vpop.f32.mrf.mxu0
    %v354 = vadd.f32 %v111, %v353
    %v355 = vpop.f32.mrf.mxu0
    %356 = vmatprep.mubr.bf16.mxu0 0
    %357 = vmatmul.mubr.bf16.gmra.mxu0 %v63
    %v358 = vpop.f32.mrf.mxu0
    %v359 = vadd.f32 %v111, %v358
    %v360 = vpop.f32.mrf.mxu0
    %v361 = vpop.f32.mrf.mxu0
    %v362 = vadd.f32 %v111, %v361
    %v363 = vpop.f32.mrf.mxu0
    %364 = vmatprep.mubr.bf16.mxu0 0
    %365 = vmatmul.mubr.bf16.gmra.mxu0 %v64
    %v366 = vpop.f32.mrf.mxu0
    %v367 = vadd.f32 %v111, %v366
    %v368 = vpop.f32.mrf.mxu0
    %v369 = vpop.f32.mrf.mxu0
    %v370 = vadd.f32 %v111, %v369
    %v371 = vpop.f32.mrf.mxu0
    %372 = vmatprep.mubr.bf16.mxu0 0
    %373 = vmatmul.mubr.bf16.gmra.mxu0 %v65
    %v374 = vpop.f32.mrf.mxu0
    %v375 = vadd.f32 %v111, %v374
    %v376 = vpop.f32.mrf.mxu0
    %v377 = vpop.f32.mrf.mxu0
    %v378 = vadd.f32 %v111, %v377
    %v379 = vpop.f32.mrf.mxu0
    %380 = vdwg.mxu0
    %381 = vst [vmem:[#allocation3] sm:$0xff] %v278
    %382 = vst [vmem:[#allocation3 + $0x8] sm:$0xff] %v280
    %383 = vst [vmem:[#allocation3 + $0x10] sm:$0xff] %v351
    %384 = vst [vmem:[#allocation3 + $0x18] sm:$0xff] %v282
    %385 = vst [vmem:[#allocation3 + $0x20] sm:$0xff] %v284
    %386 = vst [vmem:[#allocation3 + $0x28] sm:$0xff] %v354
    %387 = vst [vmem:[#allocation3 + $0x30] sm:$0xff] %v288
    %388 = vst [vmem:[#allocation3 + $0x38] sm:$0xff] %v290
    %389 = vst [vmem:[#allocation3 + $0x40] sm:$0xff] %v359
    %390 = vst [vmem:[#allocation3 + $0x48] sm:$0xff] %v292
    %391 = vst [vmem:[#allocation3 + $0x50] sm:$0xff] %v294
    %392 = vst [vmem:[#allocation3 + $0x58] sm:$0xff] %v362
    %393 = vst [vmem:[#allocation3 + $0x60] sm:$0xff] %v298
    %394 = vst [vmem:[#allocation3 + $0x68] sm:$0xff] %v300
    %395 = vst [vmem:[#allocation3 + $0x70] sm:$0xff] %v367
    %396 = vst [vmem:[#allocation3 + $0x78] sm:$0xff] %v302
    %397 = vst [vmem:[#allocation3 + $0x80] sm:$0xff] %v304
    %398 = vst [vmem:[#allocation3 + $0x88] sm:$0xff] %v370
    %399 = vst [vmem:[#allocation3 + $0x90] sm:$0xff] %v308
    %400 = vst [vmem:[#allocation3 + $0x98] sm:$0xff] %v310
    %401 = vst [vmem:[#allocation3 + $0xa0] sm:$0xff] %v375
    %402 = vst [vmem:[#allocation3 + $0xa8] sm:$0xff] %v312
    %403 = vst [vmem:[#allocation3 + $0xb0] sm:$0xff] %v314
    %404 = vst [vmem:[#allocation3 + $0xb8] sm:$0xff] %v378
    %v405 = vld [vmem:[%s4] sm:$0x1]
    %v407 = vlaneseq
    %v408 = vshrl.u32 %v407, 7
    %v409 = vsub.s32 0, %v408
    %v410 = vrot.slane %v405, %v409
    %v412 = vld [vmem:[#allocation2] sm:$0xff]
    loop: start=0, step=1, limit=8
    $region34: #{_lambda_.2} parent=1 // loop_pre_header
      _
    $region35: #{_lambda_.2} parent=1 // loop_header
      %s414 = sphi 0, %s418
      %p415 = scmp.ge.s32.totalorder %s414, 8
      %v419 = vphi %v412, %v685
    $region36: #{_lambda_.2} parent=1 // loop_header_branch
      %417 = sbr.rel (%p415) target = $region40
    $region37: #{_lambda_.2} parent=1 // loop_body
      %s420 = smul.u32 %s414, 3
      %s421 = smul.addr %s420, 8
      %s422 = scalar_lea.vmem [#allocation3], %s421
      %v423 = vld [vmem:[%s422] sm:$0xff]
      %v424 = vld [vmem:[%s422 + $0x8] sm:$0xff]
      %v425 = vld [vmem:[%s422 + $0x10] sm:$0xff]
      %v426 = vpack.c.bf16 %v419, %v419
      %v427 = vld [vmem:[#allocation6] sm:$0xff]
      %v428 = vld [vmem:[#allocation6 + $0x8] sm:$0xf]
      %v429 = vld [vmem:[#allocation6 + $0xc] sm:$0xff]
      %v430 = vld [vmem:[#allocation6 + $0x14] sm:$0xf]
      %v431 = vld [vmem:[#allocation6 + $0x18] sm:$0xff]
      %v432 = vld [vmem:[#allocation6 + $0x20] sm:$0xf]
      %v433 = vld [vmem:[#allocation6 + $0x24] sm:$0xff]
      %v434 = vld [vmem:[#allocation6 + $0x2c] sm:$0xf]
      %v435 = vld [vmem:[#allocation6 + $0x30] sm:$0xff]
      %v436 = vld [vmem:[#allocation6 + $0x38] sm:$0xf]
      %v437 = vld [vmem:[#allocation6 + $0x3c] sm:$0xff]
      %v438 = vld [vmem:[#allocation6 + $0x44] sm:$0xf]
      %v439 = vld [vmem:[#allocation6 + $0x48] sm:$0xff]
      %v440 = vld [vmem:[#allocation6 + $0x50] sm:$0xf]
      %v441 = vld [vmem:[#allocation6 + $0x54] sm:$0xff]
      %v442 = vld [vmem:[#allocation6 + $0x5c] sm:$0xf]
      %v443 = vld [vmem:[#allocation6 + $0x60] sm:$0xff]
      %v444 = vld [vmem:[#allocation6 + $0x68] sm:$0xf]
      %v445 = vld [vmem:[#allocation6 + $0x6c] sm:$0xff]
      %v446 = vld [vmem:[#allocation6 + $0x74] sm:$0xf]
      %v447 = vld [vmem:[#allocation6 + $0x78] sm:$0xff]
      %v448 = vld [vmem:[#allocation6 + $0x80] sm:$0xf]
      %v449 = vld [vmem:[#allocation6 + $0x84] sm:$0xff]
      %v450 = vld [vmem:[#allocation6 + $0x8c] sm:$0xf]
      %v451 = vld [vmem:[#allocation6 + $0x90] sm:$0xff]
      %v452 = vld [vmem:[#allocation6 + $0x98] sm:$0xf]
      %v453 = vld [vmem:[#allocation6 + $0x9c] sm:$0xff]
      %v454 = vld [vmem:[#allocation6 + $0xa4] sm:$0xf]
      %v455 = vld [vmem:[#allocation6 + $0xa8] sm:$0xff]
      %v456 = vld [vmem:[#allocation6 + $0xb0] sm:$0xf]
      %v457 = vld [vmem:[#allocation6 + $0xb4] sm:$0xff]
      %v458 = vld [vmem:[#allocation6 + $0xbc] sm:$0xf]
      %v491 = vunpack.c.l.b16 %v427
      %v492 = vunpack.c.h.b16 %v427
      %v493 = vunpack.c.l.b16 %v428
      %v494 = vunpack.c.l.b16 %v429
      %v495 = vunpack.c.h.b16 %v429
      %v496 = vunpack.c.l.b16 %v430
      %v497 = vunpack.c.l.b16 %v431
      %v498 = vunpack.c.h.b16 %v431
      %v499 = vunpack.c.l.b16 %v432
      %v500 = vunpack.c.l.b16 %v433
      %v501 = vunpack.c.h.b16 %v433
      %v502 = vunpack.c.l.b16 %v434
      %v503 = vunpack.c.l.b16 %v435
      %v504 = vunpack.c.h.b16 %v435
      %v505 = vunpack.c.l.b16 %v436
      %v506 = vunpack.c.l.b16 %v437
      %v507 = vunpack.c.h.b16 %v437
      %v508 = vunpack.c.l.b16 %v438
      %v509 = vunpack.c.l.b16 %v439
      %v510 = vunpack.c.h.b16 %v439
      %v511 = vunpack.c.l.b16 %v440
      %v512 = vunpack.c.l.b16 %v441
      %v513 = vunpack.c.h.b16 %v441
      %v514 = vunpack.c.l.b16 %v442
      %v515 = vunpack.c.l.b16 %v443
      %v516 = vunpack.c.h.b16 %v443
      %v517 = vunpack.c.l.b16 %v444
      %v518 = vunpack.c.l.b16 %v445
      %v519 = vunpack.c.h.b16 %v445
      %v520 = vunpack.c.l.b16 %v446
      %v521 = vunpack.c.l.b16 %v447
      %v522 = vunpack.c.h.b16 %v447
      %v523 = vunpack.c.l.b16 %v448
      %v524 = vunpack.c.l.b16 %v449
      %v525 = vunpack.c.h.b16 %v449
      %v526 = vunpack.c.l.b16 %v450
      %v527 = vunpack.c.l.b16 %v451
      %v528 = vunpack.c.h.b16 %v451
      %v529 = vunpack.c.l.b16 %v452
      %v530 = vunpack.c.l.b16 %v453
      %v531 = vunpack.c.h.b16 %v453
      %v532 = vunpack.c.l.b16 %v454
      %v533 = vunpack.c.l.b16 %v455
      %v534 = vunpack.c.h.b16 %v455
      %v535 = vunpack.c.l.b16 %v456
      %v536 = vunpack.c.l.b16 %v457
      %v537 = vunpack.c.h.b16 %v457
      %v538 = vunpack.c.l.b16 %v458
      %v539 = vpack.c.b16 %v494, %v491
      %v540 = vpack.c.b16 %v495, %v492
      %v541 = vpack.c.b16 %v496, %v493
      %v542 = vpack.c.b16 %v500, %v497
      %v543 = vpack.c.b16 %v501, %v498
      %v544 = vpack.c.b16 %v502, %v499
      %v545 = vpack.c.b16 %v506, %v503
      %v546 = vpack.c.b16 %v507, %v504
      %v547 = vpack.c.b16 %v508, %v505
      %v548 = vpack.c.b16 %v512, %v509
      %v549 = vpack.c.b16 %v513, %v510
      %v550 = vpack.c.b16 %v514, %v511
      %v551 = vpack.c.b16 %v518, %v515
      %v552 = vpack.c.b16 %v519, %v516
      %v553 = vpack.c.b16 %v520, %v517
      %v554 = vpack.c.b16 %v524, %v521
      %v555 = vpack.c.b16 %v525, %v522
      %v556 = vpack.c.b16 %v526, %v523
      %v557 = vpack.c.b16 %v530, %v527
      %v558 = vpack.c.b16 %v531, %v528
      %v559 = vpack.c.b16 %v532, %v529
      %v560 = vpack.c.b16 %v536, %v533
      %v561 = vpack.c.b16 %v537, %v534
      %v562 = vpack.c.b16 %v538, %v535
      %587 = vmatprep.subr.bf16.mxu0 %v561
      %588 = vmatpush1.bf16.msra.mxu0 %v560
      %589 = vmatprep.subr.bf16.mxu0 %v558
      %590 = vmatpush1.bf16.msra.mxu0 %v557
      %591 = vmatprep.subr.bf16.mxu0 %v555
      %592 = vmatpush1.bf16.msra.mxu0 %v554
      %593 = vmatprep.subr.bf16.mxu0 %v552
      %594 = vmatpush1.bf16.msra.mxu0 %v551
      %595 = vmatprep.subr.bf16.mxu0 %v549
      %596 = vmatpush1.bf16.msra.mxu0 %v548
      %597 = vmatprep.subr.bf16.mxu0 %v546
      %598 = vmatpush1.bf16.msra.mxu0 %v545
      %599 = vmatprep.subr.bf16.mxu0 %v543
      %600 = vmatpush1.bf16.msra.mxu0 %v542
      %601 = vmatprep.subr.bf16.mxu0 %v540
      %602 = vmatpush1.bf16.msra.mxu0 %v539
      %603 = vmatprep.subr.bf16.mxu0 0
      %604 = vmatpush2.bf16.msra.mxu0 0
      %605 = vmatprep.subr.bf16.mxu0 0
      %606 = vmatpush2.bf16.msra.mxu0 0
      %607 = vmatprep.subr.bf16.mxu0 0
      %608 = vmatpush2.bf16.msra.mxu0 0
      %609 = vmatprep.subr.bf16.mxu0 0
      %610 = vmatpush2.bf16.msra.mxu0 0
      %611 = vmatprep.subr.bf16.mxu0 0
      %612 = vmatpush2.bf16.msra.mxu0 0
      %613 = vmatprep.subr.bf16.mxu0 0
      %614 = vmatpush2.bf16.msra.mxu0 0
      %615 = vmatprep.subr.bf16.mxu0 0
      %616 = vmatpush2.bf16.msra.mxu0 0
      %617 = vmatprep.subr.bf16.mxu0 0
      %618 = vmatpush2.bf16.msra.mxu0 0
      %619 = vmatprep.mubr.bf16.mxu0 0
      %620 = vmatmul.mubr.bf16.gmra.mxu0 %v426
      %v621 = vpop.f32.mrf.mxu0
      %v622 = vadd.f32 0.0, %v621
      %v623 = vpop.f32.mrf.mxu0
      %v624 = vadd.f32 0.0, %v623
      %v625 = vpop.f32.mrf.mxu0
      %v626 = vpop.f32.mrf.mxu0
      %627 = vdwg.mxu0
      %628 = vmatprep.subr.bf16.mxu0 0
      %629 = vmatpush1.bf16.msra.mxu0 %v562
      %630 = vmatprep.subr.bf16.mxu0 0
      %631 = vmatpush1.bf16.msra.mxu0 %v559
      %632 = vmatprep.subr.bf16.mxu0 0
      %633 = vmatpush1.bf16.msra.mxu0 %v556
      %634 = vmatprep.subr.bf16.mxu0 0
      %635 = vmatpush1.bf16.msra.mxu0 %v553
      %636 = vmatprep.subr.bf16.mxu0 0
      %637 = vmatpush1.bf16.msra.mxu0 %v550
      %638 = vmatprep.subr.bf16.mxu0 0
      %639 = vmatpush1.bf16.msra.mxu0 %v547
      %640 = vmatprep.subr.bf16.mxu0 0
      %641 = vmatpush1.bf16.msra.mxu0 %v544
      %642 = vmatprep.subr.bf16.mxu0 0
      %643 = vmatpush1.bf16.msra.mxu0 %v541
      %644 = vmatprep.subr.bf16.mxu0 0
      %645 = vmatpush2.bf16.msra.mxu0 0
      %646 = vmatprep.subr.bf16.mxu0 0
      %647 = vmatpush2.bf16.msra.mxu0 0
      %648 = vmatprep.subr.bf16.mxu0 0
      %649 = vmatpush2.bf16.msra.mxu0 0
      %650 = vmatprep.subr.bf16.mxu0 0
      %651 = vmatpush2.bf16.msra.mxu0 0
      %652 = vmatprep.subr.bf16.mxu0 0
      %653 = vmatpush2.bf16.msra.mxu0 0
      %654 = vmatprep.subr.bf16.mxu0 0
      %655 = vmatpush2.bf16.msra.mxu0 0
      %656 = vmatprep.subr.bf16.mxu0 0
      %657 = vmatpush2.bf16.msra.mxu0 0
      %658 = vmatprep.subr.bf16.mxu0 0
      %659 = vmatpush2.bf16.msra.mxu0 0
      %660 = vmatprep.mubr.bf16.mxu0 0
      %661 = vmatmul.mubr.bf16.gmra.mxu0 %v426
      %v662 = vpop.f32.mrf.mxu0
      %v663 = vadd.f32 0.0, %v662
      %v664 = vpop.f32.mrf.mxu0
      %v665 = vpop.f32.mrf.mxu0
      %v666 = vpop.f32.mrf.mxu0
      %667 = vdwg.mxu0
      %v668 = vadd.f32 %v423, %v622
      %v669 = vmul.f32 %v668, 0.5
      %v670 = vtanh.pop %v669
      %v671 = vadd.f32 %v670, 1.0
      %v672 = vmul.f32 %v671, 0.5
      %v673 = vadd.f32 %v424, %v624
      %v674 = vmul.f32 %v673, 0.5
      %v675 = vtanh.pop %v674
      %v676 = vadd.f32 %v675, 1.0
      %v677 = vmul.f32 %v676, 0.5
      %v678 = vadd.f32 %v663, %v410
      %v679 = vmul.f32 %v672, %v678
      %v680 = vadd.f32 %v425, %v679
      %v681 = vtanh.pop %v680
      %v682 = vsub.f32 1.0, %v677
      %v683 = vmul.f32 %v682, %v681
      %v684 = vmul.f32 %v677, %v419
      %v685 = vadd.f32 %v683, %v684
      %s686 = smul.u32 %s414, 8
      %s687 = scalar_lea.vmem %s5, %s686
      %688 = vst [vmem:[%s687] sm:$0xff] %v685
    $region38: #{_lambda_.2} parent=1 // loop_footer
      %s418 = sadd.s32 1, %s414
    $region39: #{_lambda_.2} parent=1 // loop_footer_branch
      %413 = sbr.rel target = $region35
    $region40: #{_lambda_.2} parent=1 // loop_exit
      _
    %689 = vst [vmem:[#allocation2] sm:$0xff] %v419
    // Predicated region
    $region41: #{_lambda_.2} parent=1 // pred_check
      _
    $region42: #{_lambda_.2} parent=1 // pred_check_branch
      %691 = sbr.rel (0) target = $region44
    $region43: #{_lambda_.2} parent=1 // pred_region
      _
    $region44: #{_lambda_.2} parent=1 // pred_fallthru
      _
    // Predicated region
    $region45: #{_lambda_.2} parent=1 // pred_check
      _
    $region46: #{_lambda_.2} parent=1 // pred_check_branch
      %693 = sbr.rel (0) target = $region48
    $region47: #{_lambda_.2} parent=1 // pred_region
      _
    $region48: #{_lambda_.2} parent=1 // pred_fallthru
      _
    %694 = vsyncpa [#allocation5], 1
    %695 = vsyncpa [#allocation7], 1

// kernel: _lambda_.3
$region0: #{_lambda_.3}
  #allocation0 [shape = 'u32[]', space=smem, size = 0x4, offset = 0x4, fixed_abs, tag = 'smem constant byte address 0x4 - core index']
  #allocation1 [shape = 'u32[144,128]{1,0:T(1,128)}', space=vmem, size = 0x12000, scoped, tag = 'internal scratch']
  #allocation2 [shape = 'f32[8,128]{1,0:T(8,128)}', space=vmem, size = 0x1000, scoped, tag = 'scratch operand']
  #allocation3 [shape = 'f32[8,8,384]{2,1,0:T(8,128)}', space=vmem, size = 0x18000, scoped, tag = 'scratch operand']
  %s0 = inlined_call_operand.vmem [shape: f32[8,8,128], index: 0, kind: input, shape index: {}]
  %s1 = inlined_call_operand.vmem [shape: bf16[128,384], index: 1, kind: input, shape index: {}]
  %s2 = inlined_call_operand.vmem [shape: f32[1,384], index: 2, kind: input, shape index: {}]
  %s3 = inlined_call_operand.vmem [shape: bf16[128,384], index: 3, kind: input, shape index: {}]
  %s4 = inlined_call_operand.vmem [shape: f32[1,128], index: 4, kind: input, shape index: {}]
  %s5 = inlined_call_operand.vmem [shape: f32[8,8,128], index: 5, kind: output, shape index: {}]
  %s6 = sld [smem:[#allocation0]]
  $region41: #{_lambda_.3} parent=0
    _
  %s8 = ssub.s32 1, %s6
  %s9 = scalar_select 0, %s8, %s6
  // Predicated region
  $region2: #{_lambda_.3} parent=0 // pred_check
    _
  $region3: #{_lambda_.3} parent=0 // pred_check_branch
    %11 = sbr.rel (0) target = $region5
  $region4: #{_lambda_.3} parent=0 // pred_region
    _
  $region5: #{_lambda_.3} parent=0 // pred_fallthru
    _
  // Predicated region
  $region6: #{_lambda_.3} parent=0 // pred_check
    _
  $region7: #{_lambda_.3} parent=0 // pred_check_branch
    %13 = sbr.rel (0) target = $region9
  $region8: #{_lambda_.3} parent=0 // pred_region
    _
  $region9: #{_lambda_.3} parent=0 // pred_fallthru
    _
  // Predicated region
  $region10: #{_lambda_.3} parent=0 // pred_check
    _
  $region11: #{_lambda_.3} parent=0 // pred_check_branch
    %15 = sbr.rel (0) target = $region13
  $region12: #{_lambda_.3} parent=0 // pred_region
    _
  $region13: #{_lambda_.3} parent=0 // pred_fallthru
    _
  // Predicated region
  $region14: #{_lambda_.3} parent=0 // pred_check
    _
  $region15: #{_lambda_.3} parent=0 // pred_check_branch
    %17 = sbr.rel (0) target = $region17
  $region16: #{_lambda_.3} parent=0 // pred_region
    _
  $region17: #{_lambda_.3} parent=0 // pred_fallthru
    _
  // Predicated region
  $region18: #{_lambda_.3} parent=0 // pred_check
    _
  $region19: #{_lambda_.3} parent=0 // pred_check_branch
    %19 = sbr.rel (0) target = $region21
  $region20: #{_lambda_.3} parent=0 // pred_region
    _
  $region21: #{_lambda_.3} parent=0 // pred_fallthru
    _
  %p21 = scmp.eq.s32.totalorder 0, 0
  // Predicated region
  $region22: #{_lambda_.3} parent=0 // pred_check
    %p22 = pneg %p21
  $region23: #{_lambda_.3} parent=0 // pred_check_branch
    %24 = sbr.rel (%p22) target = $region25
  $region24: #{_lambda_.3} parent=0 // pred_region
    %25 = vst [vmem:[#allocation2] sm:$0xff] 0.0
  $region25: #{_lambda_.3} parent=0 // pred_fallthru
    _
  %v26 = vld [vmem:[%s0] sm:$0xff]
  %v27 = vld [vmem:[%s0 + $0x8] sm:$0xff]
  %v28 = vld [vmem:[%s0 + $0x10] sm:$0xff]
  %v29 = vld [vmem:[%s0 + $0x18] sm:$0xff]
  %v30 = vld [vmem:[%s0 + $0x20] sm:$0xff]
  %v31 = vld [vmem:[%s0 + $0x28] sm:$0xff]
  %v32 = vld [vmem:[%s0 + $0x30] sm:$0xff]
  %v33 = vld [vmem:[%s0 + $0x38] sm:$0xff]
  %v34 = vpack.c.bf16 %v27, %v26
  %v35 = vpack.c.bf16 %v29, %v28
  %v36 = vpack.c.bf16 %v31, %v30
  %v37 = vpack.c.bf16 %v33, %v32
  %v38 = vld [vmem:[%s1] sm:$0xff]
  %v39 = vld [vmem:[%s1 + $0x8] sm:$0xf]
  %v40 = vld [vmem:[%s1 + $0xc] sm:$0xff]
  %v41 = vld [vmem:[%s1 + $0x14] sm:$0xf]
  %v42 = vld [vmem:[%s1 + $0x18] sm:$0xff]
  %v43 = vld [vmem:[%s1 + $0x20] sm:$0xf]
  %v44 = vld [vmem:[%s1 + $0x24] sm:$0xff]
  %v45 = vld [vmem:[%s1 + $0x2c] sm:$0xf]
  %v46 = vld [vmem:[%s1 + $0x30] sm:$0xff]
  %v47 = vld [vmem:[%s1 + $0x38] sm:$0xf]
  %v48 = vld [vmem:[%s1 + $0x3c] sm:$0xff]
  %v49 = vld [vmem:[%s1 + $0x44] sm:$0xf]
  %v50 = vld [vmem:[%s1 + $0x48] sm:$0xff]
  %v51 = vld [vmem:[%s1 + $0x50] sm:$0xf]
  %v52 = vld [vmem:[%s1 + $0x54] sm:$0xff]
  %v53 = vld [vmem:[%s1 + $0x5c] sm:$0xf]
  %v54 = vld [vmem:[%s1 + $0x60] sm:$0xff]
  %v55 = vld [vmem:[%s1 + $0x68] sm:$0xf]
  %v56 = vld [vmem:[%s1 + $0x6c] sm:$0xff]
  %v57 = vld [vmem:[%s1 + $0x74] sm:$0xf]
  %v58 = vld [vmem:[%s1 + $0x78] sm:$0xff]
  %v59 = vld [vmem:[%s1 + $0x80] sm:$0xf]
  %v60 = vld [vmem:[%s1 + $0x84] sm:$0xff]
  %v61 = vld [vmem:[%s1 + $0x8c] sm:$0xf]
  %v62 = vld [vmem:[%s1 + $0x90] sm:$0xff]
  %v63 = vld [vmem:[%s1 + $0x98] sm:$0xf]
  %v64 = vld [vmem:[%s1 + $0x9c] sm:$0xff]
  %v65 = vld [vmem:[%s1 + $0xa4] sm:$0xf]
  %v66 = vld [vmem:[%s1 + $0xa8] sm:$0xff]
  %v67 = vld [vmem:[%s1 + $0xb0] sm:$0xf]
  %v68 = vld [vmem:[%s1 + $0xb4] sm:$0xff]
  %v69 = vld [vmem:[%s1 + $0xbc] sm:$0xf]
  %v70 = vld [vmem:[%s2] sm:$0x7]
  %v72 = vlaneseq
  %v73 = vshrl.u32 %v72, 7
  %v74 = vsub.s32 0, %v73
  %v75 = vrot.slane %v70, %v74
  %v76 = vlaneseq
  %v77 = vshrl.u32 %v76, 7
  %v78 = vsub.s32 1, %v77
  %v79 = vrot.slane %v70, %v78
  %v80 = vlaneseq
  %v81 = vshrl.u32 %v80, 7
  %v82 = vsub.s32 2, %v81
  %v83 = vrot.slane %v70, %v82
  %v119 = vunpack.c.l.b16 %v38
  %v120 = vunpack.c.h.b16 %v38
  %v121 = vunpack.c.l.b16 %v39
  %v122 = vunpack.c.l.b16 %v40
  %v123 = vunpack.c.h.b16 %v40
  %v124 = vunpack.c.l.b16 %v41
  %v125 = vunpack.c.l.b16 %v42
  %v126 = vunpack.c.h.b16 %v42
  %v127 = vunpack.c.l.b16 %v43
  %v128 = vunpack.c.l.b16 %v44
  %v129 = vunpack.c.h.b16 %v44
  %v130 = vunpack.c.l.b16 %v45
  %v131 = vunpack.c.l.b16 %v46
  %v132 = vunpack.c.h.b16 %v46
  %v133 = vunpack.c.l.b16 %v47
  %v134 = vunpack.c.l.b16 %v48
  %v135 = vunpack.c.h.b16 %v48
  %v136 = vunpack.c.l.b16 %v49
  %v137 = vunpack.c.l.b16 %v50
  %v138 = vunpack.c.h.b16 %v50
  %v139 = vunpack.c.l.b16 %v51
  %v140 = vunpack.c.l.b16 %v52
  %v141 = vunpack.c.h.b16 %v52
  %v142 = vunpack.c.l.b16 %v53
  %v143 = vunpack.c.l.b16 %v54
  %v144 = vunpack.c.h.b16 %v54
  %v145 = vunpack.c.l.b16 %v55
  %v146 = vunpack.c.l.b16 %v56
  %v147 = vunpack.c.h.b16 %v56
  %v148 = vunpack.c.l.b16 %v57
  %v149 = vunpack.c.l.b16 %v58
  %v150 = vunpack.c.h.b16 %v58
  %v151 = vunpack.c.l.b16 %v59
  %v152 = vunpack.c.l.b16 %v60
  %v153 = vunpack.c.h.b16 %v60
  %v154 = vunpack.c.l.b16 %v61
  %v155 = vunpack.c.l.b16 %v62
  %v156 = vunpack.c.h.b16 %v62
  %v157 = vunpack.c.l.b16 %v63
  %v158 = vunpack.c.l.b16 %v64
  %v159 = vunpack.c.h.b16 %v64
  %v160 = vunpack.c.l.b16 %v65
  %v161 = vunpack.c.l.b16 %v66
  %v162 = vunpack.c.h.b16 %v66
  %v163 = vunpack.c.l.b16 %v67
  %v164 = vunpack.c.l.b16 %v68
  %v165 = vunpack.c.h.b16 %v68
  %v166 = vunpack.c.l.b16 %v69
  %v167 = vpack.c.b16 %v122, %v119
  %v168 = vpack.c.b16 %v123, %v120
  %v169 = vpack.c.b16 %v124, %v121
  %v170 = vpack.c.b16 %v128, %v125
  %v171 = vpack.c.b16 %v129, %v126
  %v172 = vpack.c.b16 %v130, %v127
  %v173 = vpack.c.b16 %v134, %v131
  %v174 = vpack.c.b16 %v135, %v132
  %v175 = vpack.c.b16 %v136, %v133
  %v176 = vpack.c.b16 %v140, %v137
  %v177 = vpack.c.b16 %v141, %v138
  %v178 = vpack.c.b16 %v142, %v139
  %v179 = vpack.c.b16 %v146, %v143
  %v180 = vpack.c.b16 %v147, %v144
  %v181 = vpack.c.b16 %v148, %v145
  %v182 = vpack.c.b16 %v152, %v149
  %v183 = vpack.c.b16 %v153, %v150
  %v184 = vpack.c.b16 %v154, %v151
  %v185 = vpack.c.b16 %v158, %v155
  %v186 = vpack.c.b16 %v159, %v156
  %v187 = vpack.c.b16 %v160, %v157
  %v188 = vpack.c.b16 %v164, %v161
  %v189 = vpack.c.b16 %v165, %v162
  %v190 = vpack.c.b16 %v166, %v163
  %215 = vmatprep.subr.bf16.mxu0 %v189
  %216 = vmatpush1.bf16.msra.mxu0 %v188
  %217 = vmatprep.subr.bf16.mxu0 %v186
  %218 = vmatpush1.bf16.msra.mxu0 %v185
  %219 = vmatprep.subr.bf16.mxu0 %v183
  %220 = vmatpush1.bf16.msra.mxu0 %v182
  %221 = vmatprep.subr.bf16.mxu0 %v180
  %222 = vmatpush1.bf16.msra.mxu0 %v179
  %223 = vmatprep.subr.bf16.mxu0 %v177
  %224 = vmatpush1.bf16.msra.mxu0 %v176
  %225 = vmatprep.subr.bf16.mxu0 %v174
  %226 = vmatpush1.bf16.msra.mxu0 %v173
  %227 = vmatprep.subr.bf16.mxu0 %v171
  %228 = vmatpush1.bf16.msra.mxu0 %v170
  %229 = vmatprep.subr.bf16.mxu0 %v168
  %230 = vmatpush1.bf16.msra.mxu0 %v167
  %231 = vmatprep.subr.bf16.mxu0 0
  %232 = vmatpush2.bf16.msra.mxu0 0
  %233 = vmatprep.subr.bf16.mxu0 0
  %234 = vmatpush2.bf16.msra.mxu0 0
  %235 = vmatprep.subr.bf16.mxu0 0
  %236 = vmatpush2.bf16.msra.mxu0 0
  %237 = vmatprep.subr.bf16.mxu0 0
  %238 = vmatpush2.bf16.msra.mxu0 0
  %239 = vmatprep.subr.bf16.mxu0 0
  %240 = vmatpush2.bf16.msra.mxu0 0
  %241 = vmatprep.subr.bf16.mxu0 0
  %242 = vmatpush2.bf16.msra.mxu0 0
  %243 = vmatprep.subr.bf16.mxu0 0
  %244 = vmatpush2.bf16.msra.mxu0 0
  %245 = vmatprep.subr.bf16.mxu0 0
  %246 = vmatpush2.bf16.msra.mxu0 0
  %247 = vmatprep.mubr.bf16.mxu0 0
  %248 = vmatmul.mubr.bf16.gmra.mxu0 %v34
  %v249 = vpop.f32.mrf.mxu0
  %v250 = vadd.f32 %v75, %v249
  %v251 = vpop.f32.mrf.mxu0
  %v252 = vadd.f32 %v79, %v251
  %v253 = vpop.f32.mrf.mxu0
  %v254 = vadd.f32 %v75, %v253
  %v255 = vpop.f32.mrf.mxu0
  %v256 = vadd.f32 %v79, %v255
  %257 = vmatprep.mubr.bf16.mxu0 0
  %258 = vmatmul.mubr.bf16.gmra.mxu0 %v35
  %v259 = vpop.f32.mrf.mxu0
  %v260 = vadd.f32 %v75, %v259
  %v261 = vpop.f32.mrf.mxu0
  %v262 = vadd.f32 %v79, %v261
  %v263 = vpop.f32.mrf.mxu0
  %v264 = vadd.f32 %v75, %v263
  %v265 = vpop.f32.mrf.mxu0
  %v266 = vadd.f32 %v79, %v265
  %267 = vmatprep.mubr.bf16.mxu0 0
  %268 = vmatmul.mubr.bf16.gmra.mxu0 %v36
  %v269 = vpop.f32.mrf.mxu0
  %v270 = vadd.f32 %v75, %v269
  %v271 = vpop.f32.mrf.mxu0
  %v272 = vadd.f32 %v79, %v271
  %v273 = vpop.f32.mrf.mxu0
  %v274 = vadd.f32 %v75, %v273
  %v275 = vpop.f32.mrf.mxu0
  %v276 = vadd.f32 %v79, %v275
  %277 = vmatprep.mubr.bf16.mxu0 0
  %278 = vmatmul.mubr.bf16.gmra.mxu0 %v37
  %v279 = vpop.f32.mrf.mxu0
  %v280 = vadd.f32 %v75, %v279
  %v281 = vpop.f32.mrf.mxu0
  %v282 = vadd.f32 %v79, %v281
  %v283 = vpop.f32.mrf.mxu0
  %v284 = vadd.f32 %v75, %v283
  %v285 = vpop.f32.mrf.mxu0
  %v286 = vadd.f32 %v79, %v285
  %287 = vdwg.mxu0
  %288 = vmatprep.subr.bf16.mxu0 0
  %289 = vmatpush1.bf16.msra.mxu0 %v190
  %290 = vmatprep.subr.bf16.mxu0 0
  %291 = vmatpush1.bf16.msra.mxu0 %v187
  %292 = vmatprep.subr.bf16.mxu0 0
  %293 = vmatpush1.bf16.msra.mxu0 %v184
  %294 = vmatprep.subr.bf16.mxu0 0
  %295 = vmatpush1.bf16.msra.mxu0 %v181
  %296 = vmatprep.subr.bf16.mxu0 0
  %297 = vmatpush1.bf16.msra.mxu0 %v178
  %298 = vmatprep.subr.bf16.mxu0 0
  %299 = vmatpush1.bf16.msra.mxu0 %v175
  %300 = vmatprep.subr.bf16.mxu0 0
  %301 = vmatpush1.bf16.msra.mxu0 %v172
  %302 = vmatprep.subr.bf16.mxu0 0
  %303 = vmatpush1.bf16.msra.mxu0 %v169
  %304 = vmatprep.subr.bf16.mxu0 0
  %305 = vmatpush2.bf16.msra.mxu0 0
  %306 = vmatprep.subr.bf16.mxu0 0
  %307 = vmatpush2.bf16.msra.mxu0 0
  %308 = vmatprep.subr.bf16.mxu0 0
  %309 = vmatpush2.bf16.msra.mxu0 0
  %310 = vmatprep.subr.bf16.mxu0 0
  %311 = vmatpush2.bf16.msra.mxu0 0
  %312 = vmatprep.subr.bf16.mxu0 0
  %313 = vmatpush2.bf16.msra.mxu0 0
  %314 = vmatprep.subr.bf16.mxu0 0
  %315 = vmatpush2.bf16.msra.mxu0 0
  %316 = vmatprep.subr.bf16.mxu0 0
  %317 = vmatpush2.bf16.msra.mxu0 0
  %318 = vmatprep.subr.bf16.mxu0 0
  %319 = vmatpush2.bf16.msra.mxu0 0
  %320 = vmatprep.mubr.bf16.mxu0 0
  %321 = vmatmul.mubr.bf16.gmra.mxu0 %v34
  %v322 = vpop.f32.mrf.mxu0
  %v323 = vadd.f32 %v83, %v322
  %v324 = vpop.f32.mrf.mxu0
  %v325 = vpop.f32.mrf.mxu0
  %v326 = vadd.f32 %v83, %v325
  %v327 = vpop.f32.mrf.mxu0
  %328 = vmatprep.mubr.bf16.mxu0 0
  %329 = vmatmul.mubr.bf16.gmra.mxu0 %v35
  %v330 = vpop.f32.mrf.mxu0
  %v331 = vadd.f32 %v83, %v330
  %v332 = vpop.f32.mrf.mxu0
  %v333 = vpop.f32.mrf.mxu0
  %v334 = vadd.f32 %v83, %v333
  %v335 = vpop.f32.mrf.mxu0
  %336 = vmatprep.mubr.bf16.mxu0 0
  %337 = vmatmul.mubr.bf16.gmra.mxu0 %v36
  %v338 = vpop.f32.mrf.mxu0
  %v339 = vadd.f32 %v83, %v338
  %v340 = vpop.f32.mrf.mxu0
  %v341 = vpop.f32.mrf.mxu0
  %v342 = vadd.f32 %v83, %v341
  %v343 = vpop.f32.mrf.mxu0
  %344 = vmatprep.mubr.bf16.mxu0 0
  %345 = vmatmul.mubr.bf16.gmra.mxu0 %v37
  %v346 = vpop.f32.mrf.mxu0
  %v347 = vadd.f32 %v83, %v346
  %v348 = vpop.f32.mrf.mxu0
  %v349 = vpop.f32.mrf.mxu0
  %v350 = vadd.f32 %v83, %v349
  %v351 = vpop.f32.mrf.mxu0
  %352 = vdwg.mxu0
  %353 = vst [vmem:[#allocation3] sm:$0xff] %v250
  %354 = vst [vmem:[#allocation3 + $0x8] sm:$0xff] %v252
  %355 = vst [vmem:[#allocation3 + $0x10] sm:$0xff] %v323
  %356 = vst [vmem:[#allocation3 + $0x18] sm:$0xff] %v254
  %357 = vst [vmem:[#allocation3 + $0x20] sm:$0xff] %v256
  %358 = vst [vmem:[#allocation3 + $0x28] sm:$0xff] %v326
  %359 = vst [vmem:[#allocation3 + $0x30] sm:$0xff] %v260
  %360 = vst [vmem:[#allocation3 + $0x38] sm:$0xff] %v262
  %361 = vst [vmem:[#allocation3 + $0x40] sm:$0xff] %v331
  %362 = vst [vmem:[#allocation3 + $0x48] sm:$0xff] %v264
  %363 = vst [vmem:[#allocation3 + $0x50] sm:$0xff] %v266
  %364 = vst [vmem:[#allocation3 + $0x58] sm:$0xff] %v334
  %365 = vst [vmem:[#allocation3 + $0x60] sm:$0xff] %v270
  %366 = vst [vmem:[#allocation3 + $0x68] sm:$0xff] %v272
  %367 = vst [vmem:[#allocation3 + $0x70] sm:$0xff] %v339
  %368 = vst [vmem:[#allocation3 + $0x78] sm:$0xff] %v274
  %369 = vst [vmem:[#allocation3 + $0x80] sm:$0xff] %v276
  %370 = vst [vmem:[#allocation3 + $0x88] sm:$0xff] %v342
  %371 = vst [vmem:[#allocation3 + $0x90] sm:$0xff] %v280
  %372 = vst [vmem:[#allocation3 + $0x98] sm:$0xff] %v282
  %373 = vst [vmem:[#allocation3 + $0xa0] sm:$0xff] %v347
  %374 = vst [vmem:[#allocation3 + $0xa8] sm:$0xff] %v284
  %375 = vst [vmem:[#allocation3 + $0xb0] sm:$0xff] %v286
  %376 = vst [vmem:[#allocation3 + $0xb8] sm:$0xff] %v350
  %v377 = vld [vmem:[%s4] sm:$0x1]
  %v379 = vlaneseq
  %v380 = vshrl.u32 %v379, 7
  %v381 = vsub.s32 0, %v380
  %v382 = vrot.slane %v377, %v381
  %v384 = vld [vmem:[#allocation2] sm:$0xff]
  loop: start=0, step=1, limit=8
  $region26: #{_lambda_.3} parent=0 // loop_pre_header
    _
  $region27: #{_lambda_.3} parent=0 // loop_header
    %s386 = sphi 0, %s390
    %p387 = scmp.ge.s32.totalorder %s386, 8
    %v391 = vphi %v384, %v657
  $region28: #{_lambda_.3} parent=0 // loop_header_branch
    %389 = sbr.rel (%p387) target = $region32
  $region29: #{_lambda_.3} parent=0 // loop_body
    %s392 = smul.u32 %s386, 3
    %s393 = smul.addr %s392, 8
    %s394 = scalar_lea.vmem [#allocation3], %s393
    %v395 = vld [vmem:[%s394] sm:$0xff]
    %v396 = vld [vmem:[%s394 + $0x8] sm:$0xff]
    %v397 = vld [vmem:[%s394 + $0x10] sm:$0xff]
    %v398 = vpack.c.bf16 %v391, %v391
    %v399 = vld [vmem:[%s3] sm:$0xff]
    %v400 = vld [vmem:[%s3 + $0x8] sm:$0xf]
    %v401 = vld [vmem:[%s3 + $0xc] sm:$0xff]
    %v402 = vld [vmem:[%s3 + $0x14] sm:$0xf]
    %v403 = vld [vmem:[%s3 + $0x18] sm:$0xff]
    %v404 = vld [vmem:[%s3 + $0x20] sm:$0xf]
    %v405 = vld [vmem:[%s3 + $0x24] sm:$0xff]
    %v406 = vld [vmem:[%s3 + $0x2c] sm:$0xf]
    %v407 = vld [vmem:[%s3 + $0x30] sm:$0xff]
    %v408 = vld [vmem:[%s3 + $0x38] sm:$0xf]
    %v409 = vld [vmem:[%s3 + $0x3c] sm:$0xff]
    %v410 = vld [vmem:[%s3 + $0x44] sm:$0xf]
    %v411 = vld [vmem:[%s3 + $0x48] sm:$0xff]
    %v412 = vld [vmem:[%s3 + $0x50] sm:$0xf]
    %v413 = vld [vmem:[%s3 + $0x54] sm:$0xff]
    %v414 = vld [vmem:[%s3 + $0x5c] sm:$0xf]
    %v415 = vld [vmem:[%s3 + $0x60] sm:$0xff]
    %v416 = vld [vmem:[%s3 + $0x68] sm:$0xf]
    %v417 = vld [vmem:[%s3 + $0x6c] sm:$0xff]
    %v418 = vld [vmem:[%s3 + $0x74] sm:$0xf]
    %v419 = vld [vmem:[%s3 + $0x78] sm:$0xff]
    %v420 = vld [vmem:[%s3 + $0x80] sm:$0xf]
    %v421 = vld [vmem:[%s3 + $0x84] sm:$0xff]
    %v422 = vld [vmem:[%s3 + $0x8c] sm:$0xf]
    %v423 = vld [vmem:[%s3 + $0x90] sm:$0xff]
    %v424 = vld [vmem:[%s3 + $0x98] sm:$0xf]
    %v425 = vld [vmem:[%s3 + $0x9c] sm:$0xff]
    %v426 = vld [vmem:[%s3 + $0xa4] sm:$0xf]
    %v427 = vld [vmem:[%s3 + $0xa8] sm:$0xff]
    %v428 = vld [vmem:[%s3 + $0xb0] sm:$0xf]
    %v429 = vld [vmem:[%s3 + $0xb4] sm:$0xff]
    %v430 = vld [vmem:[%s3 + $0xbc] sm:$0xf]
    %v463 = vunpack.c.l.b16 %v399
    %v464 = vunpack.c.h.b16 %v399
    %v465 = vunpack.c.l.b16 %v400
    %v466 = vunpack.c.l.b16 %v401
    %v467 = vunpack.c.h.b16 %v401
    %v468 = vunpack.c.l.b16 %v402
    %v469 = vunpack.c.l.b16 %v403
    %v470 = vunpack.c.h.b16 %v403
    %v471 = vunpack.c.l.b16 %v404
    %v472 = vunpack.c.l.b16 %v405
    %v473 = vunpack.c.h.b16 %v405
    %v474 = vunpack.c.l.b16 %v406
    %v475 = vunpack.c.l.b16 %v407
    %v476 = vunpack.c.h.b16 %v407
    %v477 = vunpack.c.l.b16 %v408
    %v478 = vunpack.c.l.b16 %v409
    %v479 = vunpack.c.h.b16 %v409
    %v480 = vunpack.c.l.b16 %v410
    %v481 = vunpack.c.l.b16 %v411
    %v482 = vunpack.c.h.b16 %v411
    %v483 = vunpack.c.l.b16 %v412
    %v484 = vunpack.c.l.b16 %v413
    %v485 = vunpack.c.h.b16 %v413
    %v486 = vunpack.c.l.b16 %v414
    %v487 = vunpack.c.l.b16 %v415
    %v488 = vunpack.c.h.b16 %v415
    %v489 = vunpack.c.l.b16 %v416
    %v490 = vunpack.c.l.b16 %v417
    %v491 = vunpack.c.h.b16 %v417
    %v492 = vunpack.c.l.b16 %v418
    %v493 = vunpack.c.l.b16 %v419
    %v494 = vunpack.c.h.b16 %v419
    %v495 = vunpack.c.l.b16 %v420
    %v496 = vunpack.c.l.b16 %v421
    %v497 = vunpack.c.h.b16 %v421
    %v498 = vunpack.c.l.b16 %v422
    %v499 = vunpack.c.l.b16 %v423
    %v500 = vunpack.c.h.b16 %v423
    %v501 = vunpack.c.l.b16 %v424
    %v502 = vunpack.c.l.b16 %v425
    %v503 = vunpack.c.h.b16 %v425
    %v504 = vunpack.c.l.b16 %v426
    %v505 = vunpack.c.l.b16 %v427
    %v506 = vunpack.c.h.b16 %v427
    %v507 = vunpack.c.l.b16 %v428
    %v508 = vunpack.c.l.b16 %v429
    %v509 = vunpack.c.h.b16 %v429
    %v510 = vunpack.c.l.b16 %v430
    %v511 = vpack.c.b16 %v466, %v463
    %v512 = vpack.c.b16 %v467, %v464
    %v513 = vpack.c.b16 %v468, %v465
    %v514 = vpack.c.b16 %v472, %v469
    %v515 = vpack.c.b16 %v473, %v470
    %v516 = vpack.c.b16 %v474, %v471
    %v517 = vpack.c.b16 %v478, %v475
    %v518 = vpack.c.b16 %v479, %v476
    %v519 = vpack.c.b16 %v480, %v477
    %v520 = vpack.c.b16 %v484, %v481
    %v521 = vpack.c.b16 %v485, %v482
    %v522 = vpack.c.b16 %v486, %v483
    %v523 = vpack.c.b16 %v490, %v487
    %v524 = vpack.c.b16 %v491, %v488
    %v525 = vpack.c.b16 %v492, %v489
    %v526 = vpack.c.b16 %v496, %v493
    %v527 = vpack.c.b16 %v497, %v494
    %v528 = vpack.c.b16 %v498, %v495
    %v529 = vpack.c.b16 %v502, %v499
    %v530 = vpack.c.b16 %v503, %v500
    %v531 = vpack.c.b16 %v504, %v501
    %v532 = vpack.c.b16 %v508, %v505
    %v533 = vpack.c.b16 %v509, %v506
    %v534 = vpack.c.b16 %v510, %v507
    %559 = vmatprep.subr.bf16.mxu0 %v533
    %560 = vmatpush1.bf16.msra.mxu0 %v532
    %561 = vmatprep.subr.bf16.mxu0 %v530
    %562 = vmatpush1.bf16.msra.mxu0 %v529
    %563 = vmatprep.subr.bf16.mxu0 %v527
    %564 = vmatpush1.bf16.msra.mxu0 %v526
    %565 = vmatprep.subr.bf16.mxu0 %v524
    %566 = vmatpush1.bf16.msra.mxu0 %v523
    %567 = vmatprep.subr.bf16.mxu0 %v521
    %568 = vmatpush1.bf16.msra.mxu0 %v520
    %569 = vmatprep.subr.bf16.mxu0 %v518
    %570 = vmatpush1.bf16.msra.mxu0 %v517
    %571 = vmatprep.subr.bf16.mxu0 %v515
    %572 = vmatpush1.bf16.msra.mxu0 %v514
    %573 = vmatprep.subr.bf16.mxu0 %v512
    %574 = vmatpush1.bf16.msra.mxu0 %v511
    %575 = vmatprep.subr.bf16.mxu0 0
    %576 = vmatpush2.bf16.msra.mxu0 0
    %577 = vmatprep.subr.bf16.mxu0 0
    %578 = vmatpush2.bf16.msra.mxu0 0
    %579 = vmatprep.subr.bf16.mxu0 0
    %580 = vmatpush2.bf16.msra.mxu0 0
    %581 = vmatprep.subr.bf16.mxu0 0
    %582 = vmatpush2.bf16.msra.mxu0 0
    %583 = vmatprep.subr.bf16.mxu0 0
    %584 = vmatpush2.bf16.msra.mxu0 0
    %585 = vmatprep.subr.bf16.mxu0 0
    %586 = vmatpush2.bf16.msra.mxu0 0
    %587 = vmatprep.subr.bf16.mxu0 0
    %588 = vmatpush2.bf16.msra.mxu0 0
    %589 = vmatprep.subr.bf16.mxu0 0
    %590 = vmatpush2.bf16.msra.mxu0 0
    %591 = vmatprep.mubr.bf16.mxu0 0
    %592 = vmatmul.mubr.bf16.gmra.mxu0 %v398
    %v593 = vpop.f32.mrf.mxu0
    %v594 = vadd.f32 0.0, %v593
    %v595 = vpop.f32.mrf.mxu0
    %v596 = vadd.f32 0.0, %v595
    %v597 = vpop.f32.mrf.mxu0
    %v598 = vpop.f32.mrf.mxu0
    %599 = vdwg.mxu0
    %600 = vmatprep.subr.bf16.mxu0 0
    %601 = vmatpush1.bf16.msra.mxu0 %v534
    %602 = vmatprep.subr.bf16.mxu0 0
    %603 = vmatpush1.bf16.msra.mxu0 %v531
    %604 = vmatprep.subr.bf16.mxu0 0
    %605 = vmatpush1.bf16.msra.mxu0 %v528
    %606 = vmatprep.subr.bf16.mxu0 0
    %607 = vmatpush1.bf16.msra.mxu0 %v525
    %608 = vmatprep.subr.bf16.mxu0 0
    %609 = vmatpush1.bf16.msra.mxu0 %v522
    %610 = vmatprep.subr.bf16.mxu0 0
    %611 = vmatpush1.bf16.msra.mxu0 %v519
    %612 = vmatprep.subr.bf16.mxu0 0
    %613 = vmatpush1.bf16.msra.mxu0 %v516
    %614 = vmatprep.subr.bf16.mxu0 0
    %615 = vmatpush1.bf16.msra.mxu0 %v513
    %616 = vmatprep.subr.bf16.mxu0 0
    %617 = vmatpush2.bf16.msra.mxu0 0
    %618 = vmatprep.subr.bf16.mxu0 0
    %619 = vmatpush2.bf16.msra.mxu0 0
    %620 = vmatprep.subr.bf16.mxu0 0
    %621 = vmatpush2.bf16.msra.mxu0 0
    %622 = vmatprep.subr.bf16.mxu0 0
    %623 = vmatpush2.bf16.msra.mxu0 0
    %624 = vmatprep.subr.bf16.mxu0 0
    %625 = vmatpush2.bf16.msra.mxu0 0
    %626 = vmatprep.subr.bf16.mxu0 0
    %627 = vmatpush2.bf16.msra.mxu0 0
    %628 = vmatprep.subr.bf16.mxu0 0
    %629 = vmatpush2.bf16.msra.mxu0 0
    %630 = vmatprep.subr.bf16.mxu0 0
    %631 = vmatpush2.bf16.msra.mxu0 0
    %632 = vmatprep.mubr.bf16.mxu0 0
    %633 = vmatmul.mubr.bf16.gmra.mxu0 %v398
    %v634 = vpop.f32.mrf.mxu0
    %v635 = vadd.f32 0.0, %v634
    %v636 = vpop.f32.mrf.mxu0
    %v637 = vpop.f32.mrf.mxu0
    %v638 = vpop.f32.mrf.mxu0
    %639 = vdwg.mxu0
    %v640 = vadd.f32 %v395, %v594
    %v641 = vmul.f32 %v640, 0.5
    %v642 = vtanh.pop %v641
    %v643 = vadd.f32 %v642, 1.0
    %v644 = vmul.f32 %v643, 0.5
    %v645 = vadd.f32 %v396, %v596
    %v646 = vmul.f32 %v645, 0.5
    %v647 = vtanh.pop %v646
    %v648 = vadd.f32 %v647, 1.0
    %v649 = vmul.f32 %v648, 0.5
    %v650 = vadd.f32 %v635, %v382
    %v651 = vmul.f32 %v644, %v650
    %v652 = vadd.f32 %v397, %v651
    %v653 = vtanh.pop %v652
    %v654 = vsub.f32 1.0, %v649
    %v655 = vmul.f32 %v654, %v653
    %v656 = vmul.f32 %v649, %v391
    %v657 = vadd.f32 %v655, %v656
    %s658 = smul.u32 %s386, 8
    %s659 = scalar_lea.vmem %s5, %s658
    %660 = vst [vmem:[%s659] sm:$0xff] %v657
  $region30: #{_lambda_.3} parent=0 // loop_footer
    %s390 = sadd.s32 1, %s386
  $region31: #{_lambda_.3} parent=0 // loop_footer_branch
    %385 = sbr.rel target = $region27
  $region32: #{_lambda_.3} parent=0 // loop_exit
    _
  %661 = vst [vmem:[#allocation2] sm:$0xff] %v391
  // Predicated region
  $region33: #{_lambda_.3} parent=0 // pred_check
    _
  $region34: #{_lambda_.3} parent=0 // pred_check_branch
    %663 = sbr.rel (0) target = $region36
  $region35: #{_lambda_.3} parent=0 // pred_region
    _
  $region36: #{_lambda_.3} parent=0 // pred_fallthru
    _
  // Predicated region
  $region37: #{_lambda_.3} parent=0 // pred_check
    _
  $region38: #{_lambda_.3} parent=0 // pred_check_branch
    %665 = sbr.rel (0) target = $region40
  $region39: #{_lambda_.3} parent=0 // pred_region
    _
  $region40: #{_lambda_.3} parent=0 // pred_fallthru
    _

</llo_original>
